<compile_context>
chip_gen: v5e
topology: v5e:2x2
jax: 0.10.0
libtpu: 0.0.40
codegen_flags: <defaults>
</compile_context>

<pallas_src>
import math

import jax
import jax.numpy as jnp
from jax.experimental import pallas as pl
from jax.experimental.pallas import tpu as pltpu

MAX_BONDS = 6
MAX_DIFF = 4          # also the number of attention heads in the torch module
NUM_HEADS = MAX_DIFF


# ----------------------------------------------------------------------------
# Shared in-kernel computation
# ----------------------------------------------------------------------------
def _pred_weight(x, m_row, m_col, src_bond, w, b):
    """x: [Bt,L,D] f32; m_row: [Bt,1,L]; m_col: [Bt,L,1]; src_bond: [Bt,L,MAX_BONDS] i32.
    Returns (pred_weight [Bt,L,L], pad_mask [Bt,L,L], col_iota, bond_counts fn)."""
    Bt, L, D = x.shape
    hd = D // NUM_HEADS

    # Fused (conv1x1 -> MHA in_proj, q pre-scaled) projection: one MXU pass, N = 4D.
    proj = jnp.dot(x.reshape(Bt * L, D), w,
                   preferred_element_type=jnp.float32) + b          # [Bt*L, 4D]
    q_inc = proj[:, 0 * D:1 * D].reshape(Bt, L, D)
    k_inc = proj[:, 1 * D:2 * D].reshape(Bt, L, D)
    q_dec = proj[:, 2 * D:3 * D].reshape(Bt, L, D)
    k_dec = proj[:, 3 * D:4 * D].reshape(Bt, L, D)

    # key_padding_mask bias: computed once per block, reused by every head/path.
    # (-1e30 instead of -inf: fully-masked rows give a uniform 1/L row instead of
    #  NaN; those rows are zeroed by pad_mask afterwards, matching the net result.)
    neg_bias = jnp.where(m_row > 0.5, -1e30, 0.0)                   # [Bt,1,L]

    def avg_attn(q3, k3):
        acc = jnp.zeros((Bt, L, L), jnp.float32)
        for h in range(NUM_HEADS):      # static unroll; each score dot is batched over Bt
            qh = q3[:, :, h * hd:(h + 1) * hd]
            kh = k3[:, :, h * hd:(h + 1) * hd]
            s = jnp.einsum('bld,bmd->blm', qh, kh,
                           preferred_element_type=jnp.float32)       # [Bt,L,L]
            s = s + neg_bias
            s = s - jnp.max(s, axis=2, keepdims=True)
            e = jnp.exp(s)
            acc = acc + e * pl.reciprocal(jnp.sum(e, axis=2, keepdims=True),
                                          approx=True)
        return acc * (1.0 / NUM_HEADS)      # heads averaged (torch default)

    inc = avg_attn(q_inc, k_inc)
    dec = avg_attn(q_dec, k_dec)

    keep_row = 1.0 - m_row                                           # [Bt,1,L]
    keep_col = 1.0 - m_col                                           # [Bt,L,1]
    pad_mask = keep_col * keep_row                                   # [Bt,L,L]

    col_iota = jax.lax.broadcasted_iota(jnp.int32, (Bt, L, L), 2)

    def bond_counts(bd):                 # bd: [Bt,L,MAX_BONDS] i32, values in [0,L)
        c = jnp.zeros((Bt, L, L), jnp.float32)
        for t in range(MAX_BONDS):       # one-hot rows summed over bond slots
            c = c + (col_iota == bd[:, :, t:t + 1]).astype(jnp.float32)
        return c

    src_weight = bond_counts(src_bond) * pad_mask
    pred = src_weight + (inc - dec) * MAX_DIFF * pad_mask
    return pred, pad_mask, col_iota, bond_counts


# ----------------------------------------------------------------------------
# Kernel bodies
# ----------------------------------------------------------------------------
def bond_predict_kernel(x_ref, mrow_ref, mcol_ref, bond_ref, w_ref, b_ref, out_ref):
    pred, _, col_iota, _ = _pred_weight(x_ref[...], mrow_ref[...], mcol_ref[...],
                                        bond_ref[...], w_ref[...], b_ref[...])
    Bt, L, _ = pred.shape
    pw = 0.5 * (pred + jnp.swapaxes(pred, 1, 2))                     # symmetrize
    slot = jax.lax.broadcasted_iota(jnp.int32, (Bt, L, MAX_BONDS), 2)
    out = jnp.zeros((Bt, L, MAX_BONDS), jnp.int32)
    for t in range(MAX_BONDS):                                       # greedy argmax decode
        rowmax = jnp.max(pw, axis=2, keepdims=True)
        # first index attaining the row max (matches torch.argmax tie-breaking)
        idx = jnp.min(jnp.where(pw == rowmax, col_iota, L), axis=2, keepdims=True)
        out = out + idx * (slot == t).astype(jnp.int32)              # place column t
        pw = pw - (col_iota == idx).astype(jnp.float32)
    out_ref[...] = out                                               # single store per block


def bond_loss_kernel(x_ref, mrow_ref, mcol_ref, bond_ref, tbond_ref,
                     tmrow_ref, tmcol_ref, w_ref, b_ref, out_ref):
    pred, pad_mask, _, bond_counts = _pred_weight(
        x_ref[...], mrow_ref[...], mcol_ref[...], bond_ref[...],
        w_ref[...], b_ref[...])
    tm_row = tmrow_ref[...]                                          # [Bt,1,L]
    tm_col = tmcol_ref[...]                                          # [Bt,L,1]
    or_mask = 1.0 - tm_col * tm_row
    and_mask = (1.0 - tm_col) * (1.0 - tm_row)
    tgt_weight = bond_counts(tbond_ref[...]) * and_mask
    err = pred - tgt_weight
    err = err * err * pad_mask * or_mask
    out_ref[...] = jnp.sum(jnp.sum(err, axis=2, keepdims=True), axis=1, keepdims=True)


# ----------------------------------------------------------------------------
# Parameter construction (deterministic, synthetic) — fused weights
# ----------------------------------------------------------------------------
def init_params(key, dim):
    """Builds a single fused [D,4D] weight / [1,4D] bias for (q_inc,k_inc,q_dec,k_dec).
    q columns absorb the 1/sqrt(head_dim) attention scale."""
    keys = jax.random.split(key, 12)
    head_dim = dim // NUM_HEADS
    scale = 1.0 / math.sqrt(head_dim)

    def nrm(k, shape):
        return jax.random.normal(k, shape, jnp.float32) * 0.1

    def make_path(k0, k1, k2, k3, k4, k5):
        Wc_q = nrm(k0, (dim, dim)); bc_q = nrm(k1, (dim,))           # Conv1d(dim, dim, 1)
        Wc_k = nrm(k2, (dim, dim)); bc_k = nrm(k3, (dim,))           # Conv1d(dim, dim, 1)
        in_proj_w = nrm(k4, (3 * dim, dim))                          # MHA in_proj_weight
        in_proj_b = nrm(k5, (3 * dim,))                              # MHA in_proj_bias
        Wmq, bmq = in_proj_w[:dim], in_proj_b[:dim]
        Wmk, bmk = in_proj_w[dim:2 * dim], in_proj_b[dim:2 * dim]
        # q_proj = (x @ Wc^T + bc) @ Wmq^T + bmq == x @ (Wmq @ Wc)^T + (Wmq @ bc + bmq)
        Weff_q = (Wmq @ Wc_q).T * scale                              # fold attention scale
        beff_q = (Wmq @ bc_q + bmq) * scale
        Weff_k = (Wmk @ Wc_k).T
        beff_k = Wmk @ bc_k + bmk
        return Weff_q, beff_q, Weff_k, beff_k

    wiq, biq, wik, bik = make_path(*keys[0:6])
    wdq, bdq, wdk, bdk = make_path(*keys[6:12])
    w_fused = jnp.concatenate([wiq, wik, wdq, wdk], axis=1)          # [D, 4D]
    b_fused = jnp.concatenate([biq, bik, bdq, bdk], axis=0).reshape(1, 4 * dim)
    return w_fused, b_fused


# ----------------------------------------------------------------------------
# Wrapper (glue)
# ----------------------------------------------------------------------------
def _choose_bt(batch, seq_len):
    # Aim for >=128 rows in the fused projection matmul per grid step.
    return max(1, min(batch, max(1, 128 // max(seq_len, 1))))


def _pad_batch(a, b_pad, value):
    pad = b_pad - a.shape[0]
    if pad == 0:
        return a
    widths = [(0, pad)] + [(0, 0)] * (a.ndim - 1)
    return jnp.pad(a, widths, constant_values=value)


def bond_decoder_forward(molecule_embedding, src_bond, src_mask, params,
                         tgt_bond=None, tgt_mask=None):
    """Mirrors BondDecoder.forward. molecule_embedding: [L, B, D] (torch convention)."""
    L, B, D = molecule_embedding.shape
    assert D % NUM_HEADS == 0
    w_fused, b_fused = params

    bt = _choose_bt(B, L)
    b_pad = ((B + bt - 1) // bt) * bt
    nblk = b_pad // bt

    x = jnp.transpose(molecule_embedding, (1, 0, 2)).astype(jnp.float32)   # [B, L, D]
    mrow = src_mask.astype(jnp.float32)[:, None, :]                        # [B, 1, L]
    mcol = src_mask.astype(jnp.float32)[:, :, None]                        # [B, L, 1]
    bond = src_bond.astype(jnp.int32)                                      # [B, L, MAX_BONDS]

    x = _pad_batch(x, b_pad, 0.0)
    mrow = _pad_batch(mrow, b_pad, 1.0)        # padded molecules are fully masked
    mcol = _pad_batch(mcol, b_pad, 1.0)
    bond = _pad_batch(bond, b_pad, 0)

    x_spec = pl.BlockSpec((bt, L, D), lambda i: (i, 0, 0))
    mrow_spec = pl.BlockSpec((bt, 1, L), lambda i: (i, 0, 0))
    mcol_spec = pl.BlockSpec((bt, L, 1), lambda i: (i, 0, 0))
    bond_spec = pl.BlockSpec((bt, L, MAX_BONDS), lambda i: (i, 0, 0))
    w_spec = pl.BlockSpec((D, 4 * D), lambda i: (0, 0))
    b_spec = pl.BlockSpec((1, 4 * D), lambda i: (0, 0))
    cparams = pltpu.CompilerParams(
        dimension_semantics=("parallel",),     # batch blocks are independent (megacore)
        vmem_limit_bytes=64 * 1024 * 1024)

    if tgt_bond is None:
        out = pl.pallas_call(
            bond_predict_kernel,
            out_shape=jax.ShapeDtypeStruct((b_pad, L, MAX_BONDS), jnp.int32),
            grid_spec=pltpu.PrefetchScalarGridSpec(
                num_scalar_prefetch=0,
                grid=(nblk,),
                in_specs=[x_spec, mrow_spec, mcol_spec, bond_spec, w_spec, b_spec],
                out_specs=pl.BlockSpec((bt, L, MAX_BONDS), lambda i: (i, 0, 0)),
            ),
            compiler_params=cparams,
        )(x, mrow, mcol, bond, w_fused, b_fused)
        return out[:B]   # [B, L, MAX_BONDS] int32 (torch returns int64 argmax indices)
    else:
        tbond = _pad_batch(tgt_bond.astype(jnp.int32), b_pad, 0)
        tmrow = _pad_batch(tgt_mask.astype(jnp.float32)[:, None, :], b_pad, 1.0)
        tmcol = _pad_batch(tgt_mask.astype(jnp.float32)[:, :, None], b_pad, 1.0)
        out = pl.pallas_call(
            bond_loss_kernel,
            out_shape=jax.ShapeDtypeStruct((b_pad, 1, 1), jnp.float32),
            grid_spec=pltpu.PrefetchScalarGridSpec(
                num_scalar_prefetch=0,
                grid=(nblk,),
                in_specs=[x_spec, mrow_spec, mcol_spec, bond_spec, bond_spec,
                          mrow_spec, mcol_spec, w_spec, b_spec],
                out_specs=pl.BlockSpec((bt, 1, 1), lambda i: (i, 0, 0)),
            ),
            compiler_params=cparams,
        )(x, mrow, mcol, bond, tbond, tmrow, tmcol, w_fused, b_fused)
        return {"bond_loss": out[:B, 0, 0]}    # [B] per-batch loss


# ----------------------------------------------------------------------------
# Main
# ----------------------------------------------------------------------------
if __name__ == "__main__":
    key = jax.random.PRNGKey(0)
    L, B, DIM = 8, 2, 32
    k1, k2, k3, k4 = jax.random.split(key, 4)

    molecule_embedding = jax.random.normal(k1, (L, B, DIM), jnp.float32)   # [l, b, dim]
    lengths = jnp.array([L, L - 3])
    src_mask = jnp.arange(L)[None, :] >= lengths[:, None]                  # [B, L] bool, True = masked
    src_bond = jax.random.randint(k2, (B, L, MAX_BONDS), 0, L, jnp.int32)  # [B, L, MAX_BONDS]

    params = init_params(k3, DIM)

    # Inference branch (tgt_bond is None) -> greedy bond prediction
    pred_bond = bond_decoder_forward(molecule_embedding, src_bond, src_mask, params)
    jax.block_until_ready(pred_bond)
    assert pred_bond.shape == (B, L, MAX_BONDS)

    # Training branch (tgt_bond given) -> per-batch bond loss
    tgt_bond = jax.random.randint(k4, (B, L, MAX_BONDS), 0, L, jnp.int32)
    tgt_mask = src_mask
    out = bond_decoder_forward(molecule_embedding, src_bond, src_mask, params,
                               tgt_bond=tgt_bond, tgt_mask=tgt_mask)
    jax.block_until_ready(out["bond_loss"])
    assert out["bond_loss"].shape == (B,)

    print("KERNEL_OK")
</pallas_src>

<mosaic_0001>
module attributes {stable_mosaic.version = 11 : i64} {
  func.func @bond_predict_kernel(%arg0: i32, %arg1: memref<2x8x32xf32, #tpu.memory_space<vmem>>, %arg2: memref<2x1x8xf32, #tpu.memory_space<vmem>>, %arg3: memref<2x8x1xf32, #tpu.memory_space<vmem>>, %arg4: memref<2x8x6xi32, #tpu.memory_space<vmem>>, %arg5: memref<32x128xf32, #tpu.memory_space<vmem>>, %arg6: memref<1x128xf32, #tpu.memory_space<vmem>>, %arg7: memref<2x8x6xi32, #tpu.memory_space<vmem>>) attributes {dimension_semantics = [#tpu.dimension_semantics<parallel>], iteration_bounds = array<i64: 1>, scalar_prefetch = 0 : i64, scratch_operands = 0 : i64, tpu.core_type = #tpu.core_type<tc>, window_params = [{transform_indices = @transform_0, window_bounds = array<i64: 2, 8, 32>}, {transform_indices = @transform_1, window_bounds = array<i64: 2, 1, 8>}, {transform_indices = @transform_2, window_bounds = array<i64: 2, 8, 1>}, {transform_indices = @transform_3, window_bounds = array<i64: 2, 8, 6>}, {pipeline_mode = #tpu.pipeline_mode<synchronous>, transform_indices = @transform_4, window_bounds = array<i64: 32, 128>}, {pipeline_mode = #tpu.pipeline_mode<synchronous>, transform_indices = @transform_5, window_bounds = array<i64: 1, 128>}, {transform_indices = @transform_6, window_bounds = array<i64: 2, 8, 6>}]} {
    %c0 = arith.constant 0 : index
    %c0_0 = arith.constant 0 : index
    %c0_1 = arith.constant 0 : index
    %0 = vector.load %arg1[%c0, %c0_0, %c0_1] : memref<2x8x32xf32, #tpu.memory_space<vmem>>, vector<2x8x32xf32>
    %c0_2 = arith.constant 0 : index
    %c0_3 = arith.constant 0 : index
    %c0_4 = arith.constant 0 : index
    %1 = vector.load %arg2[%c0_2, %c0_3, %c0_4] : memref<2x1x8xf32, #tpu.memory_space<vmem>>, vector<2x1x8xf32>
    %c0_5 = arith.constant 0 : index
    %c0_6 = arith.constant 0 : index
    %c0_7 = arith.constant 0 : index
    %2 = vector.load %arg3[%c0_5, %c0_6, %c0_7] : memref<2x8x1xf32, #tpu.memory_space<vmem>>, vector<2x8x1xf32>
    %c0_8 = arith.constant 0 : index
    %c0_9 = arith.constant 0 : index
    %c0_10 = arith.constant 0 : index
    %3 = vector.load %arg4[%c0_8, %c0_9, %c0_10] : memref<2x8x6xi32, #tpu.memory_space<vmem>>, vector<2x8x6xi32>
    %c0_11 = arith.constant 0 : index
    %c0_12 = arith.constant 0 : index
    %4 = vector.load %arg5[%c0_11, %c0_12] : memref<32x128xf32, #tpu.memory_space<vmem>>, vector<32x128xf32>
    %c0_13 = arith.constant 0 : index
    %c0_14 = arith.constant 0 : index
    %5 = vector.load %arg6[%c0_13, %c0_14] : memref<1x128xf32, #tpu.memory_space<vmem>>, vector<1x128xf32>
    %6 = vector.shape_cast %0 : vector<2x8x32xf32> to vector<16x32xf32>
    %cst = arith.constant dense<0.000000e+00> : vector<16x128xf32>
    %7 = tpu.matmul %6, %4, %cst {dimension_numbers = #tpu.dot_dimension_numbers<[1], [0], [0], [1], [0, 0, 1, 1], [], []>} : vector<16x32xf32>, vector<32x128xf32>, vector<16x128xf32> -> vector<16x128xf32>
    %8 = vector.broadcast %5 : vector<1x128xf32> to vector<16x128xf32>
    %9 = arith.addf %7, %8 : vector<16x128xf32>
    %10 = vector.extract_strided_slice %9 {offsets = [0, 0], sizes = [16, 32], strides = [1, 1]} : vector<16x128xf32> to vector<16x32xf32>
    %11 = vector.shape_cast %10 : vector<16x32xf32> to vector<2x8x32xf32>
    %12 = vector.extract_strided_slice %9 {offsets = [0, 32], sizes = [16, 32], strides = [1, 1]} : vector<16x128xf32> to vector<16x32xf32>
    %13 = vector.shape_cast %12 : vector<16x32xf32> to vector<2x8x32xf32>
    %14 = vector.extract_strided_slice %9 {offsets = [0, 64], sizes = [16, 32], strides = [1, 1]} : vector<16x128xf32> to vector<16x32xf32>
    %15 = vector.shape_cast %14 : vector<16x32xf32> to vector<2x8x32xf32>
    %16 = vector.extract_strided_slice %9 {offsets = [0, 96], sizes = [16, 32], strides = [1, 1]} : vector<16x128xf32> to vector<16x32xf32>
    %17 = vector.shape_cast %16 : vector<16x32xf32> to vector<2x8x32xf32>
    %cst_15 = arith.constant 5.000000e-01 : f32
    %18 = vector.broadcast %cst_15 : f32 to vector<2x1x8xf32>
    %19 = arith.cmpf ogt, %1, %18 : vector<2x1x8xf32>
    %cst_16 = arith.constant -1.000000e+30 : f32
    %cst_17 = arith.constant 0.000000e+00 : f32
    %20 = vector.broadcast %cst_16 : f32 to vector<2x1x8xf32>
    %21 = vector.broadcast %cst_17 : f32 to vector<2x1x8xf32>
    %22 = arith.select %19, %20, %21 : vector<2x1x8xi1>, vector<2x1x8xf32>
    %cst_18 = arith.constant 0.000000e+00 : f32
    %23 = vector.broadcast %cst_18 : f32 to vector<2x8x8xf32>
    %24 = vector.extract_strided_slice %11 {offsets = [0, 0, 0], sizes = [2, 8, 8], strides = [1, 1, 1]} : vector<2x8x32xf32> to vector<2x8x8xf32>
    %25 = vector.extract_strided_slice %13 {offsets = [0, 0, 0], sizes = [2, 8, 8], strides = [1, 1, 1]} : vector<2x8x32xf32> to vector<2x8x8xf32>
    "tpu.trace_start"() <{level = 10 : i32, message = "bld,bmd->blm"}> : () -> ()
    %cst_19 = arith.constant dense<0.000000e+00> : vector<2x8x8xf32>
    %26 = tpu.matmul %24, %25, %cst_19 {dimension_numbers = #tpu.dot_dimension_numbers<[2], [2], [1], [1], [0, 0, 0, 1, 1, 1], [0], [0]>} : vector<2x8x8xf32>, vector<2x8x8xf32>, vector<2x8x8xf32> -> vector<2x8x8xf32>
    "tpu.trace_stop"() : () -> ()
    %27 = vector.broadcast %22 : vector<2x1x8xf32> to vector<2x8x8xf32>
    %28 = arith.addf %26, %27 : vector<2x8x8xf32>
    %cst_20 = arith.constant dense<0xFF800000> : vector<2x8xf32>
    %29 = vector.multi_reduction <maximumf>, %28, %cst_20 [2] : vector<2x8x8xf32> to vector<2x8xf32>
    %30 = vector.shape_cast %29 : vector<2x8xf32> to vector<2x8x1xf32>
    %31 = vector.broadcast %30 : vector<2x8x1xf32> to vector<2x8x8xf32>
    %32 = arith.subf %28, %31 : vector<2x8x8xf32>
    %33 = math.exp %32 : vector<2x8x8xf32>
    %cst_21 = arith.constant dense<0.000000e+00> : vector<2x8xf32>
    %34 = vector.multi_reduction <add>, %33, %cst_21 [2] : vector<2x8x8xf32> to vector<2x8xf32>
    %35 = vector.shape_cast %34 : vector<2x8xf32> to vector<2x8x1xf32>
    %36 = tpu.reciprocal %35 {approx = true} : vector<2x8x1xf32> -> vector<2x8x1xf32>
    %37 = vector.broadcast %36 : vector<2x8x1xf32> to vector<2x8x8xf32>
    %38 = arith.mulf %33, %37 : vector<2x8x8xf32>
    %39 = arith.addf %23, %38 : vector<2x8x8xf32>
    %40 = vector.extract_strided_slice %11 {offsets = [0, 0, 8], sizes = [2, 8, 8], strides = [1, 1, 1]} : vector<2x8x32xf32> to vector<2x8x8xf32>
    %41 = vector.extract_strided_slice %13 {offsets = [0, 0, 8], sizes = [2, 8, 8], strides = [1, 1, 1]} : vector<2x8x32xf32> to vector<2x8x8xf32>
    "tpu.trace_start"() <{level = 10 : i32, message = "bld,bmd->blm"}> : () -> ()
    %cst_22 = arith.constant dense<0.000000e+00> : vector<2x8x8xf32>
    %42 = tpu.matmul %40, %41, %cst_22 {dimension_numbers = #tpu.dot_dimension_numbers<[2], [2], [1], [1], [0, 0, 0, 1, 1, 1], [0], [0]>} : vector<2x8x8xf32>, vector<2x8x8xf32>, vector<2x8x8xf32> -> vector<2x8x8xf32>
    "tpu.trace_stop"() : () -> ()
    %43 = vector.broadcast %22 : vector<2x1x8xf32> to vector<2x8x8xf32>
    %44 = arith.addf %42, %43 : vector<2x8x8xf32>
    %cst_23 = arith.constant dense<0xFF800000> : vector<2x8xf32>
    %45 = vector.multi_reduction <maximumf>, %44, %cst_23 [2] : vector<2x8x8xf32> to vector<2x8xf32>
    %46 = vector.shape_cast %45 : vector<2x8xf32> to vector<2x8x1xf32>
    %47 = vector.broadcast %46 : vector<2x8x1xf32> to vector<2x8x8xf32>
    %48 = arith.subf %44, %47 : vector<2x8x8xf32>
    %49 = math.exp %48 : vector<2x8x8xf32>
    %cst_24 = arith.constant dense<0.000000e+00> : vector<2x8xf32>
    %50 = vector.multi_reduction <add>, %49, %cst_24 [2] : vector<2x8x8xf32> to vector<2x8xf32>
    %51 = vector.shape_cast %50 : vector<2x8xf32> to vector<2x8x1xf32>
    %52 = tpu.reciprocal %51 {approx = true} : vector<2x8x1xf32> -> vector<2x8x1xf32>
    %53 = vector.broadcast %52 : vector<2x8x1xf32> to vector<2x8x8xf32>
    %54 = arith.mulf %49, %53 : vector<2x8x8xf32>
    %55 = arith.addf %39, %54 : vector<2x8x8xf32>
    %56 = vector.extract_strided_slice %11 {offsets = [0, 0, 16], sizes = [2, 8, 8], strides = [1, 1, 1]} : vector<2x8x32xf32> to vector<2x8x8xf32>
    %57 = vector.extract_strided_slice %13 {offsets = [0, 0, 16], sizes = [2, 8, 8], strides = [1, 1, 1]} : vector<2x8x32xf32> to vector<2x8x8xf32>
    "tpu.trace_start"() <{level = 10 : i32, message = "bld,bmd->blm"}> : () -> ()
    %cst_25 = arith.constant dense<0.000000e+00> : vector<2x8x8xf32>
    %58 = tpu.matmul %56, %57, %cst_25 {dimension_numbers = #tpu.dot_dimension_numbers<[2], [2], [1], [1], [0, 0, 0, 1, 1, 1], [0], [0]>} : vector<2x8x8xf32>, vector<2x8x8xf32>, vector<2x8x8xf32> -> vector<2x8x8xf32>
    "tpu.trace_stop"() : () -> ()
    %59 = vector.broadcast %22 : vector<2x1x8xf32> to vector<2x8x8xf32>
    %60 = arith.addf %58, %59 : vector<2x8x8xf32>
    %cst_26 = arith.constant dense<0xFF800000> : vector<2x8xf32>
    %61 = vector.multi_reduction <maximumf>, %60, %cst_26 [2] : vector<2x8x8xf32> to vector<2x8xf32>
    %62 = vector.shape_cast %61 : vector<2x8xf32> to vector<2x8x1xf32>
    %63 = vector.broadcast %62 : vector<2x8x1xf32> to vector<2x8x8xf32>
    %64 = arith.subf %60, %63 : vector<2x8x8xf32>
    %65 = math.exp %64 : vector<2x8x8xf32>
    %cst_27 = arith.constant dense<0.000000e+00> : vector<2x8xf32>
    %66 = vector.multi_reduction <add>, %65, %cst_27 [2] : vector<2x8x8xf32> to vector<2x8xf32>
    %67 = vector.shape_cast %66 : vector<2x8xf32> to vector<2x8x1xf32>
    %68 = tpu.reciprocal %67 {approx = true} : vector<2x8x1xf32> -> vector<2x8x1xf32>
    %69 = vector.broadcast %68 : vector<2x8x1xf32> to vector<2x8x8xf32>
    %70 = arith.mulf %65, %69 : vector<2x8x8xf32>
    %71 = arith.addf %55, %70 : vector<2x8x8xf32>
    %72 = vector.extract_strided_slice %11 {offsets = [0, 0, 24], sizes = [2, 8, 8], strides = [1, 1, 1]} : vector<2x8x32xf32> to vector<2x8x8xf32>
    %73 = vector.extract_strided_slice %13 {offsets = [0, 0, 24], sizes = [2, 8, 8], strides = [1, 1, 1]} : vector<2x8x32xf32> to vector<2x8x8xf32>
    "tpu.trace_start"() <{level = 10 : i32, message = "bld,bmd->blm"}> : () -> ()
    %cst_28 = arith.constant dense<0.000000e+00> : vector<2x8x8xf32>
    %74 = tpu.matmul %72, %73, %cst_28 {dimension_numbers = #tpu.dot_dimension_numbers<[2], [2], [1], [1], [0, 0, 0, 1, 1, 1], [0], [0]>} : vector<2x8x8xf32>, vector<2x8x8xf32>, vector<2x8x8xf32> -> vector<2x8x8xf32>
    "tpu.trace_stop"() : () -> ()
    %75 = vector.broadcast %22 : vector<2x1x8xf32> to vector<2x8x8xf32>
    %76 = arith.addf %74, %75 : vector<2x8x8xf32>
    %cst_29 = arith.constant dense<0xFF800000> : vector<2x8xf32>
    %77 = vector.multi_reduction <maximumf>, %76, %cst_29 [2] : vector<2x8x8xf32> to vector<2x8xf32>
    %78 = vector.shape_cast %77 : vector<2x8xf32> to vector<2x8x1xf32>
    %79 = vector.broadcast %78 : vector<2x8x1xf32> to vector<2x8x8xf32>
    %80 = arith.subf %76, %79 : vector<2x8x8xf32>
    %81 = math.exp %80 : vector<2x8x8xf32>
    %cst_30 = arith.constant dense<0.000000e+00> : vector<2x8xf32>
    %82 = vector.multi_reduction <add>, %81, %cst_30 [2] : vector<2x8x8xf32> to vector<2x8xf32>
    %83 = vector.shape_cast %82 : vector<2x8xf32> to vector<2x8x1xf32>
    %84 = tpu.reciprocal %83 {approx = true} : vector<2x8x1xf32> -> vector<2x8x1xf32>
    %85 = vector.broadcast %84 : vector<2x8x1xf32> to vector<2x8x8xf32>
    %86 = arith.mulf %81, %85 : vector<2x8x8xf32>
    %87 = arith.addf %71, %86 : vector<2x8x8xf32>
    %cst_31 = arith.constant 2.500000e-01 : f32
    %88 = vector.broadcast %cst_31 : f32 to vector<2x8x8xf32>
    %89 = arith.mulf %87, %88 : vector<2x8x8xf32>
    %cst_32 = arith.constant 0.000000e+00 : f32
    %90 = vector.broadcast %cst_32 : f32 to vector<2x8x8xf32>
    %91 = vector.extract_strided_slice %15 {offsets = [0, 0, 0], sizes = [2, 8, 8], strides = [1, 1, 1]} : vector<2x8x32xf32> to vector<2x8x8xf32>
    %92 = vector.extract_strided_slice %17 {offsets = [0, 0, 0], sizes = [2, 8, 8], strides = [1, 1, 1]} : vector<2x8x32xf32> to vector<2x8x8xf32>
    "tpu.trace_start"() <{level = 10 : i32, message = "bld,bmd->blm"}> : () -> ()
    %cst_33 = arith.constant dense<0.000000e+00> : vector<2x8x8xf32>
    %93 = tpu.matmul %91, %92, %cst_33 {dimension_numbers = #tpu.dot_dimension_numbers<[2], [2], [1], [1], [0, 0, 0, 1, 1, 1], [0], [0]>} : vector<2x8x8xf32>, vector<2x8x8xf32>, vector<2x8x8xf32> -> vector<2x8x8xf32>
    "tpu.trace_stop"() : () -> ()
    %94 = vector.broadcast %22 : vector<2x1x8xf32> to vector<2x8x8xf32>
    %95 = arith.addf %93, %94 : vector<2x8x8xf32>
    %cst_34 = arith.constant dense<0xFF800000> : vector<2x8xf32>
    %96 = vector.multi_reduction <maximumf>, %95, %cst_34 [2] : vector<2x8x8xf32> to vector<2x8xf32>
    %97 = vector.shape_cast %96 : vector<2x8xf32> to vector<2x8x1xf32>
    %98 = vector.broadcast %97 : vector<2x8x1xf32> to vector<2x8x8xf32>
    %99 = arith.subf %95, %98 : vector<2x8x8xf32>
    %100 = math.exp %99 : vector<2x8x8xf32>
    %cst_35 = arith.constant dense<0.000000e+00> : vector<2x8xf32>
    %101 = vector.multi_reduction <add>, %100, %cst_35 [2] : vector<2x8x8xf32> to vector<2x8xf32>
    %102 = vector.shape_cast %101 : vector<2x8xf32> to vector<2x8x1xf32>
    %103 = tpu.reciprocal %102 {approx = true} : vector<2x8x1xf32> -> vector<2x8x1xf32>
    %104 = vector.broadcast %103 : vector<2x8x1xf32> to vector<2x8x8xf32>
    %105 = arith.mulf %100, %104 : vector<2x8x8xf32>
    %106 = arith.addf %90, %105 : vector<2x8x8xf32>
    %107 = vector.extract_strided_slice %15 {offsets = [0, 0, 8], sizes = [2, 8, 8], strides = [1, 1, 1]} : vector<2x8x32xf32> to vector<2x8x8xf32>
    %108 = vector.extract_strided_slice %17 {offsets = [0, 0, 8], sizes = [2, 8, 8], strides = [1, 1, 1]} : vector<2x8x32xf32> to vector<2x8x8xf32>
    "tpu.trace_start"() <{level = 10 : i32, message = "bld,bmd->blm"}> : () -> ()
    %cst_36 = arith.constant dense<0.000000e+00> : vector<2x8x8xf32>
    %109 = tpu.matmul %107, %108, %cst_36 {dimension_numbers = #tpu.dot_dimension_numbers<[2], [2], [1], [1], [0, 0, 0, 1, 1, 1], [0], [0]>} : vector<2x8x8xf32>, vector<2x8x8xf32>, vector<2x8x8xf32> -> vector<2x8x8xf32>
    "tpu.trace_stop"() : () -> ()
    %110 = vector.broadcast %22 : vector<2x1x8xf32> to vector<2x8x8xf32>
    %111 = arith.addf %109, %110 : vector<2x8x8xf32>
    %cst_37 = arith.constant dense<0xFF800000> : vector<2x8xf32>
    %112 = vector.multi_reduction <maximumf>, %111, %cst_37 [2] : vector<2x8x8xf32> to vector<2x8xf32>
    %113 = vector.shape_cast %112 : vector<2x8xf32> to vector<2x8x1xf32>
    %114 = vector.broadcast %113 : vector<2x8x1xf32> to vector<2x8x8xf32>
    %115 = arith.subf %111, %114 : vector<2x8x8xf32>
    %116 = math.exp %115 : vector<2x8x8xf32>
    %cst_38 = arith.constant dense<0.000000e+00> : vector<2x8xf32>
    %117 = vector.multi_reduction <add>, %116, %cst_38 [2] : vector<2x8x8xf32> to vector<2x8xf32>
    %118 = vector.shape_cast %117 : vector<2x8xf32> to vector<2x8x1xf32>
    %119 = tpu.reciprocal %118 {approx = true} : vector<2x8x1xf32> -> vector<2x8x1xf32>
    %120 = vector.broadcast %119 : vector<2x8x1xf32> to vector<2x8x8xf32>
    %121 = arith.mulf %116, %120 : vector<2x8x8xf32>
    %122 = arith.addf %106, %121 : vector<2x8x8xf32>
    %123 = vector.extract_strided_slice %15 {offsets = [0, 0, 16], sizes = [2, 8, 8], strides = [1, 1, 1]} : vector<2x8x32xf32> to vector<2x8x8xf32>
    %124 = vector.extract_strided_slice %17 {offsets = [0, 0, 16], sizes = [2, 8, 8], strides = [1, 1, 1]} : vector<2x8x32xf32> to vector<2x8x8xf32>
    "tpu.trace_start"() <{level = 10 : i32, message = "bld,bmd->blm"}> : () -> ()
    %cst_39 = arith.constant dense<0.000000e+00> : vector<2x8x8xf32>
    %125 = tpu.matmul %123, %124, %cst_39 {dimension_numbers = #tpu.dot_dimension_numbers<[2], [2], [1], [1], [0, 0, 0, 1, 1, 1], [0], [0]>} : vector<2x8x8xf32>, vector<2x8x8xf32>, vector<2x8x8xf32> -> vector<2x8x8xf32>
    "tpu.trace_stop"() : () -> ()
    %126 = vector.broadcast %22 : vector<2x1x8xf32> to vector<2x8x8xf32>
    %127 = arith.addf %125, %126 : vector<2x8x8xf32>
    %cst_40 = arith.constant dense<0xFF800000> : vector<2x8xf32>
    %128 = vector.multi_reduction <maximumf>, %127, %cst_40 [2] : vector<2x8x8xf32> to vector<2x8xf32>
    %129 = vector.shape_cast %128 : vector<2x8xf32> to vector<2x8x1xf32>
    %130 = vector.broadcast %129 : vector<2x8x1xf32> to vector<2x8x8xf32>
    %131 = arith.subf %127, %130 : vector<2x8x8xf32>
    %132 = math.exp %131 : vector<2x8x8xf32>
    %cst_41 = arith.constant dense<0.000000e+00> : vector<2x8xf32>
    %133 = vector.multi_reduction <add>, %132, %cst_41 [2] : vector<2x8x8xf32> to vector<2x8xf32>
    %134 = vector.shape_cast %133 : vector<2x8xf32> to vector<2x8x1xf32>
    %135 = tpu.reciprocal %134 {approx = true} : vector<2x8x1xf32> -> vector<2x8x1xf32>
    %136 = vector.broadcast %135 : vector<2x8x1xf32> to vector<2x8x8xf32>
    %137 = arith.mulf %132, %136 : vector<2x8x8xf32>
    %138 = arith.addf %122, %137 : vector<2x8x8xf32>
    %139 = vector.extract_strided_slice %15 {offsets = [0, 0, 24], sizes = [2, 8, 8], strides = [1, 1, 1]} : vector<2x8x32xf32> to vector<2x8x8xf32>
    %140 = vector.extract_strided_slice %17 {offsets = [0, 0, 24], sizes = [2, 8, 8], strides = [1, 1, 1]} : vector<2x8x32xf32> to vector<2x8x8xf32>
    "tpu.trace_start"() <{level = 10 : i32, message = "bld,bmd->blm"}> : () -> ()
    %cst_42 = arith.constant dense<0.000000e+00> : vector<2x8x8xf32>
    %141 = tpu.matmul %139, %140, %cst_42 {dimension_numbers = #tpu.dot_dimension_numbers<[2], [2], [1], [1], [0, 0, 0, 1, 1, 1], [0], [0]>} : vector<2x8x8xf32>, vector<2x8x8xf32>, vector<2x8x8xf32> -> vector<2x8x8xf32>
    "tpu.trace_stop"() : () -> ()
    %142 = vector.broadcast %22 : vector<2x1x8xf32> to vector<2x8x8xf32>
    %143 = arith.addf %141, %142 : vector<2x8x8xf32>
    %cst_43 = arith.constant dense<0xFF800000> : vector<2x8xf32>
    %144 = vector.multi_reduction <maximumf>, %143, %cst_43 [2] : vector<2x8x8xf32> to vector<2x8xf32>
    %145 = vector.shape_cast %144 : vector<2x8xf32> to vector<2x8x1xf32>
    %146 = vector.broadcast %145 : vector<2x8x1xf32> to vector<2x8x8xf32>
    %147 = arith.subf %143, %146 : vector<2x8x8xf32>
    %148 = math.exp %147 : vector<2x8x8xf32>
    %cst_44 = arith.constant dense<0.000000e+00> : vector<2x8xf32>
    %149 = vector.multi_reduction <add>, %148, %cst_44 [2] : vector<2x8x8xf32> to vector<2x8xf32>
    %150 = vector.shape_cast %149 : vector<2x8xf32> to vector<2x8x1xf32>
    %151 = tpu.reciprocal %150 {approx = true} : vector<2x8x1xf32> -> vector<2x8x1xf32>
    %152 = vector.broadcast %151 : vector<2x8x1xf32> to vector<2x8x8xf32>
    %153 = arith.mulf %148, %152 : vector<2x8x8xf32>
    %154 = arith.addf %138, %153 : vector<2x8x8xf32>
    %cst_45 = arith.constant 2.500000e-01 : f32
    %155 = vector.broadcast %cst_45 : f32 to vector<2x8x8xf32>
    %156 = arith.mulf %154, %155 : vector<2x8x8xf32>
    %cst_46 = arith.constant 1.000000e+00 : f32
    %157 = vector.broadcast %cst_46 : f32 to vector<2x1x8xf32>
    %158 = arith.subf %157, %1 : vector<2x1x8xf32>
    %cst_47 = arith.constant 1.000000e+00 : f32
    %159 = vector.broadcast %cst_47 : f32 to vector<2x8x1xf32>
    %160 = arith.subf %159, %2 : vector<2x8x1xf32>
    %161 = vector.broadcast %160 : vector<2x8x1xf32> to vector<2x8x8xf32>
    %162 = vector.broadcast %158 : vector<2x1x8xf32> to vector<2x8x8xf32>
    %163 = arith.mulf %161, %162 : vector<2x8x8xf32>
    %164 = tpu.iota {dimensions = array<i32: 2>} : vector<2x8x8xi32>
    %cst_48 = arith.constant 0.000000e+00 : f32
    %165 = vector.broadcast %cst_48 : f32 to vector<2x8x8xf32>
    %166 = vector.extract_strided_slice %3 {offsets = [0, 0, 0], sizes = [2, 8, 1], strides = [1, 1, 1]} : vector<2x8x6xi32> to vector<2x8x1xi32>
    %167 = vector.broadcast %166 : vector<2x8x1xi32> to vector<2x8x8xi32>
    %168 = arith.cmpi eq, %164, %167 : vector<2x8x8xi32>
    %169 = arith.extui %168 : vector<2x8x8xi1> to vector<2x8x8xi32>
    %170 = arith.sitofp %169 : vector<2x8x8xi32> to vector<2x8x8xf32>
    %171 = arith.addf %165, %170 : vector<2x8x8xf32>
    %172 = vector.extract_strided_slice %3 {offsets = [0, 0, 1], sizes = [2, 8, 1], strides = [1, 1, 1]} : vector<2x8x6xi32> to vector<2x8x1xi32>
    %173 = vector.broadcast %172 : vector<2x8x1xi32> to vector<2x8x8xi32>
    %174 = arith.cmpi eq, %164, %173 : vector<2x8x8xi32>
    %175 = arith.extui %174 : vector<2x8x8xi1> to vector<2x8x8xi32>
    %176 = arith.sitofp %175 : vector<2x8x8xi32> to vector<2x8x8xf32>
    %177 = arith.addf %171, %176 : vector<2x8x8xf32>
    %178 = vector.extract_strided_slice %3 {offsets = [0, 0, 2], sizes = [2, 8, 1], strides = [1, 1, 1]} : vector<2x8x6xi32> to vector<2x8x1xi32>
    %179 = vector.broadcast %178 : vector<2x8x1xi32> to vector<2x8x8xi32>
    %180 = arith.cmpi eq, %164, %179 : vector<2x8x8xi32>
    %181 = arith.extui %180 : vector<2x8x8xi1> to vector<2x8x8xi32>
    %182 = arith.sitofp %181 : vector<2x8x8xi32> to vector<2x8x8xf32>
    %183 = arith.addf %177, %182 : vector<2x8x8xf32>
    %184 = vector.extract_strided_slice %3 {offsets = [0, 0, 3], sizes = [2, 8, 1], strides = [1, 1, 1]} : vector<2x8x6xi32> to vector<2x8x1xi32>
    %185 = vector.broadcast %184 : vector<2x8x1xi32> to vector<2x8x8xi32>
    %186 = arith.cmpi eq, %164, %185 : vector<2x8x8xi32>
    %187 = arith.extui %186 : vector<2x8x8xi1> to vector<2x8x8xi32>
    %188 = arith.sitofp %187 : vector<2x8x8xi32> to vector<2x8x8xf32>
    %189 = arith.addf %183, %188 : vector<2x8x8xf32>
    %190 = vector.extract_strided_slice %3 {offsets = [0, 0, 4], sizes = [2, 8, 1], strides = [1, 1, 1]} : vector<2x8x6xi32> to vector<2x8x1xi32>
    %191 = vector.broadcast %190 : vector<2x8x1xi32> to vector<2x8x8xi32>
    %192 = arith.cmpi eq, %164, %191 : vector<2x8x8xi32>
    %193 = arith.extui %192 : vector<2x8x8xi1> to vector<2x8x8xi32>
    %194 = arith.sitofp %193 : vector<2x8x8xi32> to vector<2x8x8xf32>
    %195 = arith.addf %189, %194 : vector<2x8x8xf32>
    %196 = vector.extract_strided_slice %3 {offsets = [0, 0, 5], sizes = [2, 8, 1], strides = [1, 1, 1]} : vector<2x8x6xi32> to vector<2x8x1xi32>
    %197 = vector.broadcast %196 : vector<2x8x1xi32> to vector<2x8x8xi32>
    %198 = arith.cmpi eq, %164, %197 : vector<2x8x8xi32>
    %199 = arith.extui %198 : vector<2x8x8xi1> to vector<2x8x8xi32>
    %200 = arith.sitofp %199 : vector<2x8x8xi32> to vector<2x8x8xf32>
    %201 = arith.addf %195, %200 : vector<2x8x8xf32>
    %202 = arith.mulf %201, %163 : vector<2x8x8xf32>
    %203 = arith.subf %89, %156 : vector<2x8x8xf32>
    %cst_49 = arith.constant 4.000000e+00 : f32
    %204 = vector.broadcast %cst_49 : f32 to vector<2x8x8xf32>
    %205 = arith.mulf %203, %204 : vector<2x8x8xf32>
    %206 = arith.mulf %205, %163 : vector<2x8x8xf32>
    %207 = arith.addf %202, %206 : vector<2x8x8xf32>
    %208 = tpu.transpose %207, [0, 2, 1] : vector<2x8x8xf32> -> vector<2x8x8xf32>
    %209 = arith.addf %207, %208 : vector<2x8x8xf32>
    %cst_50 = arith.constant 5.000000e-01 : f32
    %210 = vector.broadcast %cst_50 : f32 to vector<2x8x8xf32>
    %211 = arith.mulf %210, %209 : vector<2x8x8xf32>
    %212 = tpu.iota {dimensions = array<i32: 2>} : vector<2x8x6xi32>
    %c0_i32 = arith.constant 0 : i32
    %213 = vector.broadcast %c0_i32 : i32 to vector<2x8x6xi32>
    %cst_51 = arith.constant dense<0xFF800000> : vector<2x8xf32>
    %214 = vector.multi_reduction <maximumf>, %211, %cst_51 [2] : vector<2x8x8xf32> to vector<2x8xf32>
    %215 = vector.shape_cast %214 : vector<2x8xf32> to vector<2x8x1xf32>
    %216 = vector.broadcast %215 : vector<2x8x1xf32> to vector<2x8x8xf32>
    %217 = arith.cmpf oeq, %211, %216 : vector<2x8x8xf32>
    %c8_i32 = arith.constant 8 : i32
    %218 = vector.broadcast %c8_i32 : i32 to vector<2x8x8xi32>
    %219 = arith.select %217, %164, %218 : vector<2x8x8xi1>, vector<2x8x8xi32>
    %cst_52 = arith.constant dense<2147483647> : vector<2x8xi32>
    %220 = vector.multi_reduction <minsi>, %219, %cst_52 [2] : vector<2x8x8xi32> to vector<2x8xi32>
    %221 = vector.shape_cast %220 : vector<2x8xi32> to vector<2x8x1xi32>
    %c0_i32_53 = arith.constant 0 : i32
    %222 = vector.broadcast %c0_i32_53 : i32 to vector<2x8x6xi32>
    %223 = arith.cmpi eq, %212, %222 : vector<2x8x6xi32>
    %224 = arith.extui %223 : vector<2x8x6xi1> to vector<2x8x6xi32>
    %225 = vector.broadcast %221 : vector<2x8x1xi32> to vector<2x8x6xi32>
    %226 = arith.muli %225, %224 : vector<2x8x6xi32>
    %227 = arith.addi %213, %226 : vector<2x8x6xi32>
    %228 = vector.broadcast %221 : vector<2x8x1xi32> to vector<2x8x8xi32>
    %229 = arith.cmpi eq, %164, %228 : vector<2x8x8xi32>
    %230 = arith.extui %229 : vector<2x8x8xi1> to vector<2x8x8xi32>
    %231 = arith.sitofp %230 : vector<2x8x8xi32> to vector<2x8x8xf32>
    %232 = arith.subf %211, %231 : vector<2x8x8xf32>
    %cst_54 = arith.constant dense<0xFF800000> : vector<2x8xf32>
    %233 = vector.multi_reduction <maximumf>, %232, %cst_54 [2] : vector<2x8x8xf32> to vector<2x8xf32>
    %234 = vector.shape_cast %233 : vector<2x8xf32> to vector<2x8x1xf32>
    %235 = vector.broadcast %234 : vector<2x8x1xf32> to vector<2x8x8xf32>
    %236 = arith.cmpf oeq, %232, %235 : vector<2x8x8xf32>
    %c8_i32_55 = arith.constant 8 : i32
    %237 = vector.broadcast %c8_i32_55 : i32 to vector<2x8x8xi32>
    %238 = arith.select %236, %164, %237 : vector<2x8x8xi1>, vector<2x8x8xi32>
    %cst_56 = arith.constant dense<2147483647> : vector<2x8xi32>
    %239 = vector.multi_reduction <minsi>, %238, %cst_56 [2] : vector<2x8x8xi32> to vector<2x8xi32>
    %240 = vector.shape_cast %239 : vector<2x8xi32> to vector<2x8x1xi32>
    %c1_i32 = arith.constant 1 : i32
    %241 = vector.broadcast %c1_i32 : i32 to vector<2x8x6xi32>
    %242 = arith.cmpi eq, %212, %241 : vector<2x8x6xi32>
    %243 = arith.extui %242 : vector<2x8x6xi1> to vector<2x8x6xi32>
    %244 = vector.broadcast %240 : vector<2x8x1xi32> to vector<2x8x6xi32>
    %245 = arith.muli %244, %243 : vector<2x8x6xi32>
    %246 = arith.addi %227, %245 : vector<2x8x6xi32>
    %247 = vector.broadcast %240 : vector<2x8x1xi32> to vector<2x8x8xi32>
    %248 = arith.cmpi eq, %164, %247 : vector<2x8x8xi32>
    %249 = arith.extui %248 : vector<2x8x8xi1> to vector<2x8x8xi32>
    %250 = arith.sitofp %249 : vector<2x8x8xi32> to vector<2x8x8xf32>
    %251 = arith.subf %232, %250 : vector<2x8x8xf32>
    %cst_57 = arith.constant dense<0xFF800000> : vector<2x8xf32>
    %252 = vector.multi_reduction <maximumf>, %251, %cst_57 [2] : vector<2x8x8xf32> to vector<2x8xf32>
    %253 = vector.shape_cast %252 : vector<2x8xf32> to vector<2x8x1xf32>
    %254 = vector.broadcast %253 : vector<2x8x1xf32> to vector<2x8x8xf32>
    %255 = arith.cmpf oeq, %251, %254 : vector<2x8x8xf32>
    %c8_i32_58 = arith.constant 8 : i32
    %256 = vector.broadcast %c8_i32_58 : i32 to vector<2x8x8xi32>
    %257 = arith.select %255, %164, %256 : vector<2x8x8xi1>, vector<2x8x8xi32>
    %cst_59 = arith.constant dense<2147483647> : vector<2x8xi32>
    %258 = vector.multi_reduction <minsi>, %257, %cst_59 [2] : vector<2x8x8xi32> to vector<2x8xi32>
    %259 = vector.shape_cast %258 : vector<2x8xi32> to vector<2x8x1xi32>
    %c2_i32 = arith.constant 2 : i32
    %260 = vector.broadcast %c2_i32 : i32 to vector<2x8x6xi32>
    %261 = arith.cmpi eq, %212, %260 : vector<2x8x6xi32>
    %262 = arith.extui %261 : vector<2x8x6xi1> to vector<2x8x6xi32>
    %263 = vector.broadcast %259 : vector<2x8x1xi32> to vector<2x8x6xi32>
    %264 = arith.muli %263, %262 : vector<2x8x6xi32>
    %265 = arith.addi %246, %264 : vector<2x8x6xi32>
    %266 = vector.broadcast %259 : vector<2x8x1xi32> to vector<2x8x8xi32>
    %267 = arith.cmpi eq, %164, %266 : vector<2x8x8xi32>
    %268 = arith.extui %267 : vector<2x8x8xi1> to vector<2x8x8xi32>
    %269 = arith.sitofp %268 : vector<2x8x8xi32> to vector<2x8x8xf32>
    %270 = arith.subf %251, %269 : vector<2x8x8xf32>
    %cst_60 = arith.constant dense<0xFF800000> : vector<2x8xf32>
    %271 = vector.multi_reduction <maximumf>, %270, %cst_60 [2] : vector<2x8x8xf32> to vector<2x8xf32>
    %272 = vector.shape_cast %271 : vector<2x8xf32> to vector<2x8x1xf32>
    %273 = vector.broadcast %272 : vector<2x8x1xf32> to vector<2x8x8xf32>
    %274 = arith.cmpf oeq, %270, %273 : vector<2x8x8xf32>
    %c8_i32_61 = arith.constant 8 : i32
    %275 = vector.broadcast %c8_i32_61 : i32 to vector<2x8x8xi32>
    %276 = arith.select %274, %164, %275 : vector<2x8x8xi1>, vector<2x8x8xi32>
    %cst_62 = arith.constant dense<2147483647> : vector<2x8xi32>
    %277 = vector.multi_reduction <minsi>, %276, %cst_62 [2] : vector<2x8x8xi32> to vector<2x8xi32>
    %278 = vector.shape_cast %277 : vector<2x8xi32> to vector<2x8x1xi32>
    %c3_i32 = arith.constant 3 : i32
    %279 = vector.broadcast %c3_i32 : i32 to vector<2x8x6xi32>
    %280 = arith.cmpi eq, %212, %279 : vector<2x8x6xi32>
    %281 = arith.extui %280 : vector<2x8x6xi1> to vector<2x8x6xi32>
    %282 = vector.broadcast %278 : vector<2x8x1xi32> to vector<2x8x6xi32>
    %283 = arith.muli %282, %281 : vector<2x8x6xi32>
    %284 = arith.addi %265, %283 : vector<2x8x6xi32>
    %285 = vector.broadcast %278 : vector<2x8x1xi32> to vector<2x8x8xi32>
    %286 = arith.cmpi eq, %164, %285 : vector<2x8x8xi32>
    %287 = arith.extui %286 : vector<2x8x8xi1> to vector<2x8x8xi32>
    %288 = arith.sitofp %287 : vector<2x8x8xi32> to vector<2x8x8xf32>
    %289 = arith.subf %270, %288 : vector<2x8x8xf32>
    %cst_63 = arith.constant dense<0xFF800000> : vector<2x8xf32>
    %290 = vector.multi_reduction <maximumf>, %289, %cst_63 [2] : vector<2x8x8xf32> to vector<2x8xf32>
    %291 = vector.shape_cast %290 : vector<2x8xf32> to vector<2x8x1xf32>
    %292 = vector.broadcast %291 : vector<2x8x1xf32> to vector<2x8x8xf32>
    %293 = arith.cmpf oeq, %289, %292 : vector<2x8x8xf32>
    %c8_i32_64 = arith.constant 8 : i32
    %294 = vector.broadcast %c8_i32_64 : i32 to vector<2x8x8xi32>
    %295 = arith.select %293, %164, %294 : vector<2x8x8xi1>, vector<2x8x8xi32>
    %cst_65 = arith.constant dense<2147483647> : vector<2x8xi32>
    %296 = vector.multi_reduction <minsi>, %295, %cst_65 [2] : vector<2x8x8xi32> to vector<2x8xi32>
    %297 = vector.shape_cast %296 : vector<2x8xi32> to vector<2x8x1xi32>
    %c4_i32 = arith.constant 4 : i32
    %298 = vector.broadcast %c4_i32 : i32 to vector<2x8x6xi32>
    %299 = arith.cmpi eq, %212, %298 : vector<2x8x6xi32>
    %300 = arith.extui %299 : vector<2x8x6xi1> to vector<2x8x6xi32>
    %301 = vector.broadcast %297 : vector<2x8x1xi32> to vector<2x8x6xi32>
    %302 = arith.muli %301, %300 : vector<2x8x6xi32>
    %303 = arith.addi %284, %302 : vector<2x8x6xi32>
    %304 = vector.broadcast %297 : vector<2x8x1xi32> to vector<2x8x8xi32>
    %305 = arith.cmpi eq, %164, %304 : vector<2x8x8xi32>
    %306 = arith.extui %305 : vector<2x8x8xi1> to vector<2x8x8xi32>
    %307 = arith.sitofp %306 : vector<2x8x8xi32> to vector<2x8x8xf32>
    %308 = arith.subf %289, %307 : vector<2x8x8xf32>
    %cst_66 = arith.constant dense<0xFF800000> : vector<2x8xf32>
    %309 = vector.multi_reduction <maximumf>, %308, %cst_66 [2] : vector<2x8x8xf32> to vector<2x8xf32>
    %310 = vector.shape_cast %309 : vector<2x8xf32> to vector<2x8x1xf32>
    %311 = vector.broadcast %310 : vector<2x8x1xf32> to vector<2x8x8xf32>
    %312 = arith.cmpf oeq, %308, %311 : vector<2x8x8xf32>
    %c8_i32_67 = arith.constant 8 : i32
    %313 = vector.broadcast %c8_i32_67 : i32 to vector<2x8x8xi32>
    %314 = arith.select %312, %164, %313 : vector<2x8x8xi1>, vector<2x8x8xi32>
    %cst_68 = arith.constant dense<2147483647> : vector<2x8xi32>
    %315 = vector.multi_reduction <minsi>, %314, %cst_68 [2] : vector<2x8x8xi32> to vector<2x8xi32>
    %316 = vector.shape_cast %315 : vector<2x8xi32> to vector<2x8x1xi32>
    %c5_i32 = arith.constant 5 : i32
    %317 = vector.broadcast %c5_i32 : i32 to vector<2x8x6xi32>
    %318 = arith.cmpi eq, %212, %317 : vector<2x8x6xi32>
    %319 = arith.extui %318 : vector<2x8x6xi1> to vector<2x8x6xi32>
    %320 = vector.broadcast %316 : vector<2x8x1xi32> to vector<2x8x6xi32>
    %321 = arith.muli %320, %319 : vector<2x8x6xi32>
    %322 = arith.addi %303, %321 : vector<2x8x6xi32>
    %c0_69 = arith.constant 0 : index
    %c0_70 = arith.constant 0 : index
    %c0_71 = arith.constant 0 : index
    %323 = vector.load %arg7[%c0_69, %c0_70, %c0_71] : memref<2x8x6xi32, #tpu.memory_space<vmem>>, vector<2x8x6xi32>
    tpu.vector_store %arg7[%c0_69, %c0_70, %c0_71], %322 {strides = array<i32>} : memref<2x8x6xi32, #tpu.memory_space<vmem>>, vector<2x8x6xi32>,
    return
  }
  func.func @transform_0(%arg0: i32) -> (i32, i32, i32) {
    %c0_i32 = arith.constant 0 : i32
    %c0_i32_0 = arith.constant 0 : i32
    %c0_i32_1 = arith.constant 0 : i32
    return %arg0, %c0_i32, %c0_i32_0 : i32, i32, i32
  }
  func.func @transform_1(%arg0: i32) -> (i32, i32, i32) {
    %c0_i32 = arith.constant 0 : i32
    %c0_i32_0 = arith.constant 0 : i32
    %c0_i32_1 = arith.constant 0 : i32
    return %arg0, %c0_i32, %c0_i32_0 : i32, i32, i32
  }
  func.func @transform_2(%arg0: i32) -> (i32, i32, i32) {
    %c0_i32 = arith.constant 0 : i32
    %c0_i32_0 = arith.constant 0 : i32
    %c0_i32_1 = arith.constant 0 : i32
    return %arg0, %c0_i32, %c0_i32_0 : i32, i32, i32
  }
  func.func @transform_3(%arg0: i32) -> (i32, i32, i32) {
    %c0_i32 = arith.constant 0 : i32
    %c0_i32_0 = arith.constant 0 : i32
    %c0_i32_1 = arith.constant 0 : i32
    return %arg0, %c0_i32, %c0_i32_0 : i32, i32, i32
  }
  func.func @transform_4(%arg0: i32) -> (i32, i32) {
    %c0_i32 = arith.constant 0 : i32
    %c0_i32_0 = arith.constant 0 : i32
    %c0_i32_1 = arith.constant 0 : i32
    return %c0_i32, %c0_i32_0 : i32, i32
  }
  func.func @transform_5(%arg0: i32) -> (i32, i32) {
    %c0_i32 = arith.constant 0 : i32
    %c0_i32_0 = arith.constant 0 : i32
    %c0_i32_1 = arith.constant 0 : i32
    return %c0_i32, %c0_i32_0 : i32, i32
  }
  func.func @transform_6(%arg0: i32) -> (i32, i32, i32) {
    %c0_i32 = arith.constant 0 : i32
    %c0_i32_0 = arith.constant 0 : i32
    %c0_i32_1 = arith.constant 0 : i32
    return %arg0, %c0_i32, %c0_i32_0 : i32, i32, i32
  }
}

</mosaic_0001>

<llo_original>
// kernel: tpu_custom_call.1
$region0: #{tpu_custom_call.1}
  #allocation0 [shape = 'u32[]', space=smem, size = 0x4, offset = 0x4, fixed_abs, tag = 'smem constant byte address 0x4 - core index']
  #allocation1 [shape = 'u32[72,128]{1,0:T(1,128)}', space=vmem, size = 0x9000, scoped, tag = 'internal scratch']
  %s0 = inlined_call_operand.hbm [shape: f32[2,8,32], index: 0, kind: input, shape index: {}]
  %s1 = inlined_call_operand.vmem [shape: f32[2,1,8], index: 1, kind: input, shape index: {}]
  %s2 = inlined_call_operand.vmem [shape: f32[2,8,1], index: 2, kind: input, shape index: {}]
  %s3 = inlined_call_operand.vmem [shape: s32[2,8,6], index: 3, kind: input, shape index: {}]
  %s4 = inlined_call_operand.vmem [shape: f32[32,128], index: 4, kind: input, shape index: {}]
  %s5 = inlined_call_operand.vmem [shape: f32[1,128], index: 5, kind: input, shape index: {}]
  %s6 = inlined_call_operand.vmem [shape: s32[2,8,6], index: 6, kind: output, shape index: {}]
  %s7 = sld [smem:[#allocation0]]
  $region38: #{tpu_custom_call.1} parent=0
    _
  %s9 = ssub.s32 1, %s7
  %s10 = scalar_select 0, %s9, %s7
  $region1: #{tpu_custom_call.1} parent=0
    #allocation2 [shape = 'u8[8192]{0}', space=vmem, size = 0x2000, scoped, tag = 'input window, operand 0, single buffered']
    #allocation3 [shape = 's32[1]{0}', space=sflag, size = 0x4, scoped, tag = 'scoped memory for tpu_custom_call.1']
    %11 = vsyncpa [#allocation3], 0
    // Predicated region
    $region2: #{tpu_custom_call.1} parent=1 // pred_check
      _
    $region3: #{tpu_custom_call.1} parent=1 // pred_check_branch
      %13 = sbr.rel (0) target = $region5
    $region4: #{tpu_custom_call.1} parent=1 // pred_region
      %15 = vsyncadd [#allocation3], 0
      %s16 = sshll.u32 %s0, 4
      %s17 = int_to_ptr.hbm [resolvable:$true] %s16
      %s18 = sshll.u32 [#allocation2], 4
      %s19 = int_to_ptr.vmem [resolvable:$true] %s18
      %24 = dma.hbm_to_vmem [thread:$0]  %s17, 256, %s19, [#allocation3], 128, 128, 8
    $region5: #{tpu_custom_call.1} parent=1 // pred_fallthru
      _
    // Predicated region
    $region6: #{tpu_custom_call.1} parent=1 // pred_check
      _
    $region7: #{tpu_custom_call.1} parent=1 // pred_check_branch
      %26 = sbr.rel (0) target = $region9
    $region8: #{tpu_custom_call.1} parent=1 // pred_region
      _
    $region9: #{tpu_custom_call.1} parent=1 // pred_fallthru
      _
    // Predicated region
    $region10: #{tpu_custom_call.1} parent=1 // pred_check
      _
    $region11: #{tpu_custom_call.1} parent=1 // pred_check_branch
      %28 = sbr.rel (0) target = $region13
    $region12: #{tpu_custom_call.1} parent=1 // pred_region
      _
    $region13: #{tpu_custom_call.1} parent=1 // pred_fallthru
      _
    // Predicated region
    $region14: #{tpu_custom_call.1} parent=1 // pred_check
      _
    $region15: #{tpu_custom_call.1} parent=1 // pred_check_branch
      %30 = sbr.rel (0) target = $region17
    $region16: #{tpu_custom_call.1} parent=1 // pred_region
      _
    $region17: #{tpu_custom_call.1} parent=1 // pred_fallthru
      _
    // Predicated region
    $region18: #{tpu_custom_call.1} parent=1 // pred_check
      _
    $region19: #{tpu_custom_call.1} parent=1 // pred_check_branch
      %32 = sbr.rel (0) target = $region21
    $region20: #{tpu_custom_call.1} parent=1 // pred_region
      _
    $region21: #{tpu_custom_call.1} parent=1 // pred_fallthru
      _
    // Predicated region
    $region22: #{tpu_custom_call.1} parent=1 // pred_check
      _
    $region23: #{tpu_custom_call.1} parent=1 // pred_check_branch
      %34 = sbr.rel (0) target = $region25
    $region24: #{tpu_custom_call.1} parent=1 // pred_region
      _
    $region25: #{tpu_custom_call.1} parent=1 // pred_fallthru
      _
    // Predicated region
    $region26: #{tpu_custom_call.1} parent=1 // pred_check
      _
    $region27: #{tpu_custom_call.1} parent=1 // pred_check_branch
      %36 = sbr.rel (0) target = $region29
    $region28: #{tpu_custom_call.1} parent=1 // pred_region
      %38 = dma.done [#allocation3], 256
    $region29: #{tpu_custom_call.1} parent=1 // pred_fallthru
      _
    %v39 = vld [vmem:[#allocation2] sm:$0xff]
    %v40 = vld [vmem:[#allocation2 + $0x8] sm:$0xff]
    %v41 = vld [vmem:[%s1] sm:$0x1]
    %v42 = vld [vmem:[%s1 + $0x1] sm:$0x1]
    %v43 = vld [vmem:[%s2] sm:$0xff]
    %v44 = vld [vmem:[%s2 + $0x8] sm:$0xff]
    %v45 = vld [vmem:[%s3] sm:$0xff]
    %v46 = vld [vmem:[%s3 + $0x8] sm:$0xff]
    %v47 = vld [vmem:[%s4] sm:$0xff]
    %v48 = vld [vmem:[%s4 + $0x8] sm:$0xff]
    %v49 = vld [vmem:[%s4 + $0x10] sm:$0xff]
    %v50 = vld [vmem:[%s4 + $0x18] sm:$0xff]
    %v51 = vld [vmem:[%s5] sm:$0x1]
    %v53 = vperm.slane %v51, 0
    %vm55 = vcmask 261120
    %v57 = vsel %vm55, %v39, 0
    %v60 = vsel %vm55, %v40, 0
    %62 = vmatpush.msra.mxu0 0.0
    %63 = vmatpush.msra.mxu0 0.0
    %64 = vmatpush.msra.mxu0 0.0
    %65 = vmatpush.msra.mxu0 0.0
    %66 = vmatpush.msra.mxu0 0.0
    %67 = vmatpush.msra.mxu0 0.0
    %68 = vmatpush.msra.mxu0 0.0
    %69 = vmatpush.msra.mxu0 0.0
    %70 = vmatpush.msra.mxu0 0.0
    %71 = vmatpush.msra.mxu0 0.0
    %72 = vmatpush.msra.mxu0 0.0
    %73 = vmatpush.msra.mxu0 0.0
    %74 = vmatpush.msra.mxu0 %v50
    %75 = vmatpush.msra.mxu0 %v49
    %76 = vmatpush.msra.mxu0 %v48
    %77 = vmatpush.msra.mxu0 %v47
    %78 = vmatmul.f32.gmra.mxu0 %v57
    %v79 = vpop.f32.mrf.mxu0
    %v80 = vadd.f32 %v53, %v79
    %81 = vmatmul.f32.gmra.mxu0 %v60
    %v82 = vpop.f32.mrf.mxu0
    %v83 = vadd.f32 %v53, %v82
    %84 = vdwg.mxu0
    %vm85 = vcmp.gt.f32.partialorder %v41, 0.5
    %vm86 = vcmp.gt.f32.partialorder %v42, 0.5
    %v87 = vsel %vm85, -1e+30, 0.0
    %v88 = vsel %vm86, -1e+30, 0.0
    %v91 = vperm.slane %v87, 0
    %v92 = vperm.slane %v88, 0
    %96 = vrot.lane.b32.xlu0 %v80, 96
    %v97 = vpop.permute.xlu0 %96
    %vm98 = vcmask 64512
    %v99 = vsel %vm98, %v80, 0
    %v101 = vsel %vm98, %v97, 0
    %103 = vmatpush.xpose.msra.mxu0 0.0
    %104 = vmatpush.xpose.msra.mxu0 0.0
    %105 = vmatpush.xpose.msra.mxu0 0.0
    %106 = vmatpush.xpose.msra.mxu0 0.0
    %107 = vmatpush.xpose.msra.mxu0 0.0
    %108 = vmatpush.xpose.msra.mxu0 0.0
    %109 = vmatpush.xpose.msra.mxu0 0.0
    %110 = vmatpush.xpose.msra.mxu0 0.0
    %111 = vmatpush.xpose.msra.mxu0 0.0
    %112 = vmatpush.xpose.msra.mxu0 0.0
    %113 = vmatpush.xpose.msra.mxu0 0.0
    %114 = vmatpush.xpose.msra.mxu0 0.0
    %115 = vmatpush.xpose.msra.mxu0 0.0
    %116 = vmatpush.xpose.msra.mxu0 0.0
    %117 = vmatpush.xpose.msra.mxu0 0.0
    %118 = vmatpush.xpose.msra.mxu0 %v101
    %119 = vmatmul.f32.gmra.mxu0 %v99
    %v120 = vpop.f32.mrf.mxu0
    %v121 = vadd.f32 %v91, %v120
    %122 = vdwg.mxu0
    %124 = vrot.lane.b32.xlu0 %v83, 96
    %v125 = vpop.permute.xlu0 %124
    %v126 = vsel %vm98, %v83, 0
    %v128 = vsel %vm98, %v125, 0
    %130 = vmatpush.xpose.msra.mxu0 0.0
    %131 = vmatpush.xpose.msra.mxu0 0.0
    %132 = vmatpush.xpose.msra.mxu0 0.0
    %133 = vmatpush.xpose.msra.mxu0 0.0
    %134 = vmatpush.xpose.msra.mxu0 0.0
    %135 = vmatpush.xpose.msra.mxu0 0.0
    %136 = vmatpush.xpose.msra.mxu0 0.0
    %137 = vmatpush.xpose.msra.mxu0 0.0
    %138 = vmatpush.xpose.msra.mxu0 0.0
    %139 = vmatpush.xpose.msra.mxu0 0.0
    %140 = vmatpush.xpose.msra.mxu0 0.0
    %141 = vmatpush.xpose.msra.mxu0 0.0
    %142 = vmatpush.xpose.msra.mxu0 0.0
    %143 = vmatpush.xpose.msra.mxu0 0.0
    %144 = vmatpush.xpose.msra.mxu0 0.0
    %145 = vmatpush.xpose.msra.mxu0 %v128
    %146 = vmatmul.f32.gmra.mxu0 %v126
    %v147 = vpop.f32.mrf.mxu0
    %v148 = vadd.f32 %v92, %v147
    %149 = vdwg.mxu0
    %v150 = vsel %vm98, %v121, -inf
    %151 = vmax.xlane.f32.xlu0 %v150
    %v152 = vpop.xlane.xlu0 %151
    %v153 = vsel %vm98, %v148, -inf
    %154 = vmax.xlane.f32.xlu0 %v153
    %v155 = vpop.xlane.xlu0 %154
    %v156 = vsub.f32 %v121, %v152
    %v157 = vsub.f32 %v148, %v155
    %v158 = vmul.f32 %v156, 1.442695
    %v159 = vpow.pop %v158
    %v160 = vmul.f32 %v157, 1.442695
    %v161 = vpow.pop %v160
    %v162 = vsel %vm98, %v159, 0.0
    %163 = vadd.xlane.f32.xlu0 %v162
    %v164 = vpop.xlane.xlu0 %163
    %v165 = vsel %vm98, %v161, 0.0
    %166 = vadd.xlane.f32.xlu0 %v165
    %v167 = vpop.xlane.xlu0 %166
    %v168 = vrcp.pop %v164
    %v169 = vrcp.pop %v167
    %v170 = vmul.f32 %v159, %v168
    %v171 = vmul.f32 %v161, %v169
    %v172 = vadd.f32 %v170, 0.0
    %v173 = vadd.f32 %v171, 0.0
    %174 = vrot.lane.b32.xlu0 %v80, 120
    %v175 = vpop.permute.xlu0 %174
    %176 = vrot.lane.b32.xlu0 %v80, 88
    %v177 = vpop.permute.xlu0 %176
    %v178 = vsel %vm98, %v175, 0
    %v180 = vsel %vm98, %v177, 0
    %182 = vmatpush.xpose.msra.mxu0 0.0
    %183 = vmatpush.xpose.msra.mxu0 0.0
    %184 = vmatpush.xpose.msra.mxu0 0.0
    %185 = vmatpush.xpose.msra.mxu0 0.0
    %186 = vmatpush.xpose.msra.mxu0 0.0
    %187 = vmatpush.xpose.msra.mxu0 0.0
    %188 = vmatpush.xpose.msra.mxu0 0.0
    %189 = vmatpush.xpose.msra.mxu0 0.0
    %190 = vmatpush.xpose.msra.mxu0 0.0
    %191 = vmatpush.xpose.msra.mxu0 0.0
    %192 = vmatpush.xpose.msra.mxu0 0.0
    %193 = vmatpush.xpose.msra.mxu0 0.0
    %194 = vmatpush.xpose.msra.mxu0 0.0
    %195 = vmatpush.xpose.msra.mxu0 0.0
    %196 = vmatpush.xpose.msra.mxu0 0.0
    %197 = vmatpush.xpose.msra.mxu0 %v180
    %198 = vmatmul.f32.gmra.mxu0 %v178
    %v199 = vpop.f32.mrf.mxu0
    %v200 = vadd.f32 %v91, %v199
    %201 = vdwg.mxu0
    %202 = vrot.lane.b32.xlu0 %v83, 120
    %v203 = vpop.permute.xlu0 %202
    %204 = vrot.lane.b32.xlu0 %v83, 88
    %v205 = vpop.permute.xlu0 %204
    %v206 = vsel %vm98, %v203, 0
    %v208 = vsel %vm98, %v205, 0
    %210 = vmatpush.xpose.msra.mxu0 0.0
    %211 = vmatpush.xpose.msra.mxu0 0.0
    %212 = vmatpush.xpose.msra.mxu0 0.0
    %213 = vmatpush.xpose.msra.mxu0 0.0
    %214 = vmatpush.xpose.msra.mxu0 0.0
    %215 = vmatpush.xpose.msra.mxu0 0.0
    %216 = vmatpush.xpose.msra.mxu0 0.0
    %217 = vmatpush.xpose.msra.mxu0 0.0
    %218 = vmatpush.xpose.msra.mxu0 0.0
    %219 = vmatpush.xpose.msra.mxu0 0.0
    %220 = vmatpush.xpose.msra.mxu0 0.0
    %221 = vmatpush.xpose.msra.mxu0 0.0
    %222 = vmatpush.xpose.msra.mxu0 0.0
    %223 = vmatpush.xpose.msra.mxu0 0.0
    %224 = vmatpush.xpose.msra.mxu0 0.0
    %225 = vmatpush.xpose.msra.mxu0 %v208
    %226 = vmatmul.f32.gmra.mxu0 %v206
    %v227 = vpop.f32.mrf.mxu0
    %v228 = vadd.f32 %v92, %v227
    %229 = vdwg.mxu0
    %v230 = vsel %vm98, %v200, -inf
    %231 = vmax.xlane.f32.xlu0 %v230
    %v232 = vpop.xlane.xlu0 %231
    %v233 = vsel %vm98, %v228, -inf
    %234 = vmax.xlane.f32.xlu0 %v233
    %v235 = vpop.xlane.xlu0 %234
    %v236 = vsub.f32 %v200, %v232
    %v237 = vsub.f32 %v228, %v235
    %v238 = vmul.f32 %v236, 1.442695
    %v239 = vpow.pop %v238
    %v240 = vmul.f32 %v237, 1.442695
    %v241 = vpow.pop %v240
    %v242 = vsel %vm98, %v239, 0.0
    %243 = vadd.xlane.f32.xlu0 %v242
    %v244 = vpop.xlane.xlu0 %243
    %v245 = vsel %vm98, %v241, 0.0
    %246 = vadd.xlane.f32.xlu0 %v245
    %v247 = vpop.xlane.xlu0 %246
    %v248 = vrcp.pop %v244
    %v249 = vrcp.pop %v247
    %v250 = vmul.f32 %v239, %v248
    %v251 = vmul.f32 %v241, %v249
    %v252 = vadd.f32 %v172, %v250
    %v253 = vadd.f32 %v173, %v251
    %254 = vrot.lane.b32.xlu0 %v80, 112
    %v255 = vpop.permute.xlu0 %254
    %256 = vrot.lane.b32.xlu0 %v80, 80
    %v257 = vpop.permute.xlu0 %256
    %v258 = vsel %vm98, %v255, 0
    %v260 = vsel %vm98, %v257, 0
    %262 = vmatpush.xpose.msra.mxu0 0.0
    %263 = vmatpush.xpose.msra.mxu0 0.0
    %264 = vmatpush.xpose.msra.mxu0 0.0
    %265 = vmatpush.xpose.msra.mxu0 0.0
    %266 = vmatpush.xpose.msra.mxu0 0.0
    %267 = vmatpush.xpose.msra.mxu0 0.0
    %268 = vmatpush.xpose.msra.mxu0 0.0
    %269 = vmatpush.xpose.msra.mxu0 0.0
    %270 = vmatpush.xpose.msra.mxu0 0.0
    %271 = vmatpush.xpose.msra.mxu0 0.0
    %272 = vmatpush.xpose.msra.mxu0 0.0
    %273 = vmatpush.xpose.msra.mxu0 0.0
    %274 = vmatpush.xpose.msra.mxu0 0.0
    %275 = vmatpush.xpose.msra.mxu0 0.0
    %276 = vmatpush.xpose.msra.mxu0 0.0
    %277 = vmatpush.xpose.msra.mxu0 %v260
    %278 = vmatmul.f32.gmra.mxu0 %v258
    %v279 = vpop.f32.mrf.mxu0
    %v280 = vadd.f32 %v91, %v279
    %281 = vdwg.mxu0
    %282 = vrot.lane.b32.xlu0 %v83, 112
    %v283 = vpop.permute.xlu0 %282
    %284 = vrot.lane.b32.xlu0 %v83, 80
    %v285 = vpop.permute.xlu0 %284
    %v286 = vsel %vm98, %v283, 0
    %v288 = vsel %vm98, %v285, 0
    %290 = vmatpush.xpose.msra.mxu0 0.0
    %291 = vmatpush.xpose.msra.mxu0 0.0
    %292 = vmatpush.xpose.msra.mxu0 0.0
    %293 = vmatpush.xpose.msra.mxu0 0.0
    %294 = vmatpush.xpose.msra.mxu0 0.0
    %295 = vmatpush.xpose.msra.mxu0 0.0
    %296 = vmatpush.xpose.msra.mxu0 0.0
    %297 = vmatpush.xpose.msra.mxu0 0.0
    %298 = vmatpush.xpose.msra.mxu0 0.0
    %299 = vmatpush.xpose.msra.mxu0 0.0
    %300 = vmatpush.xpose.msra.mxu0 0.0
    %301 = vmatpush.xpose.msra.mxu0 0.0
    %302 = vmatpush.xpose.msra.mxu0 0.0
    %303 = vmatpush.xpose.msra.mxu0 0.0
    %304 = vmatpush.xpose.msra.mxu0 0.0
    %305 = vmatpush.xpose.msra.mxu0 %v288
    %306 = vmatmul.f32.gmra.mxu0 %v286
    %v307 = vpop.f32.mrf.mxu0
    %v308 = vadd.f32 %v92, %v307
    %309 = vdwg.mxu0
    %v310 = vsel %vm98, %v280, -inf
    %311 = vmax.xlane.f32.xlu0 %v310
    %v312 = vpop.xlane.xlu0 %311
    %v313 = vsel %vm98, %v308, -inf
    %314 = vmax.xlane.f32.xlu0 %v313
    %v315 = vpop.xlane.xlu0 %314
    %v316 = vsub.f32 %v280, %v312
    %v317 = vsub.f32 %v308, %v315
    %v318 = vmul.f32 %v316, 1.442695
    %v319 = vpow.pop %v318
    %v320 = vmul.f32 %v317, 1.442695
    %v321 = vpow.pop %v320
    %v322 = vsel %vm98, %v319, 0.0
    %323 = vadd.xlane.f32.xlu0 %v322
    %v324 = vpop.xlane.xlu0 %323
    %v325 = vsel %vm98, %v321, 0.0
    %326 = vadd.xlane.f32.xlu0 %v325
    %v327 = vpop.xlane.xlu0 %326
    %v328 = vrcp.pop %v324
    %v329 = vrcp.pop %v327
    %v330 = vmul.f32 %v319, %v328
    %v331 = vmul.f32 %v321, %v329
    %v332 = vadd.f32 %v252, %v330
    %v333 = vadd.f32 %v253, %v331
    %334 = vrot.lane.b32.xlu0 %v80, 104
    %v335 = vpop.permute.xlu0 %334
    %336 = vrot.lane.b32.xlu0 %v80, 72
    %v337 = vpop.permute.xlu0 %336
    %v338 = vsel %vm98, %v335, 0
    %v340 = vsel %vm98, %v337, 0
    %342 = vmatpush.xpose.msra.mxu0 0.0
    %343 = vmatpush.xpose.msra.mxu0 0.0
    %344 = vmatpush.xpose.msra.mxu0 0.0
    %345 = vmatpush.xpose.msra.mxu0 0.0
    %346 = vmatpush.xpose.msra.mxu0 0.0
    %347 = vmatpush.xpose.msra.mxu0 0.0
    %348 = vmatpush.xpose.msra.mxu0 0.0
    %349 = vmatpush.xpose.msra.mxu0 0.0
    %350 = vmatpush.xpose.msra.mxu0 0.0
    %351 = vmatpush.xpose.msra.mxu0 0.0
    %352 = vmatpush.xpose.msra.mxu0 0.0
    %353 = vmatpush.xpose.msra.mxu0 0.0
    %354 = vmatpush.xpose.msra.mxu0 0.0
    %355 = vmatpush.xpose.msra.mxu0 0.0
    %356 = vmatpush.xpose.msra.mxu0 0.0
    %357 = vmatpush.xpose.msra.mxu0 %v340
    %358 = vmatmul.f32.gmra.mxu0 %v338
    %v359 = vpop.f32.mrf.mxu0
    %v360 = vadd.f32 %v91, %v359
    %361 = vdwg.mxu0
    %362 = vrot.lane.b32.xlu0 %v83, 104
    %v363 = vpop.permute.xlu0 %362
    %364 = vrot.lane.b32.xlu0 %v83, 72
    %v365 = vpop.permute.xlu0 %364
    %v366 = vsel %vm98, %v363, 0
    %v368 = vsel %vm98, %v365, 0
    %370 = vmatpush.xpose.msra.mxu0 0.0
    %371 = vmatpush.xpose.msra.mxu0 0.0
    %372 = vmatpush.xpose.msra.mxu0 0.0
    %373 = vmatpush.xpose.msra.mxu0 0.0
    %374 = vmatpush.xpose.msra.mxu0 0.0
    %375 = vmatpush.xpose.msra.mxu0 0.0
    %376 = vmatpush.xpose.msra.mxu0 0.0
    %377 = vmatpush.xpose.msra.mxu0 0.0
    %378 = vmatpush.xpose.msra.mxu0 0.0
    %379 = vmatpush.xpose.msra.mxu0 0.0
    %380 = vmatpush.xpose.msra.mxu0 0.0
    %381 = vmatpush.xpose.msra.mxu0 0.0
    %382 = vmatpush.xpose.msra.mxu0 0.0
    %383 = vmatpush.xpose.msra.mxu0 0.0
    %384 = vmatpush.xpose.msra.mxu0 0.0
    %385 = vmatpush.xpose.msra.mxu0 %v368
    %386 = vmatmul.f32.gmra.mxu0 %v366
    %v387 = vpop.f32.mrf.mxu0
    %v388 = vadd.f32 %v92, %v387
    %389 = vdwg.mxu0
    %v390 = vsel %vm98, %v360, -inf
    %391 = vmax.xlane.f32.xlu0 %v390
    %v392 = vpop.xlane.xlu0 %391
    %v393 = vsel %vm98, %v388, -inf
    %394 = vmax.xlane.f32.xlu0 %v393
    %v395 = vpop.xlane.xlu0 %394
    %v396 = vsub.f32 %v360, %v392
    %v397 = vsub.f32 %v388, %v395
    %v398 = vmul.f32 %v396, 1.442695
    %v399 = vpow.pop %v398
    %v400 = vmul.f32 %v397, 1.442695
    %v401 = vpow.pop %v400
    %v402 = vsel %vm98, %v399, 0.0
    %403 = vadd.xlane.f32.xlu0 %v402
    %v404 = vpop.xlane.xlu0 %403
    %v405 = vsel %vm98, %v401, 0.0
    %406 = vadd.xlane.f32.xlu0 %v405
    %v407 = vpop.xlane.xlu0 %406
    %v408 = vrcp.pop %v404
    %v409 = vrcp.pop %v407
    %v410 = vmul.f32 %v399, %v408
    %v411 = vmul.f32 %v401, %v409
    %v412 = vadd.f32 %v332, %v410
    %v413 = vadd.f32 %v333, %v411
    %v414 = vmul.f32 %v412, 0.25
    %v415 = vmul.f32 %v413, 0.25
    %416 = vrot.lane.b32.xlu0 %v80, 64
    %v417 = vpop.permute.xlu0 %416
    %418 = vrot.lane.b32.xlu0 %v80, 32
    %v419 = vpop.permute.xlu0 %418
    %v420 = vsel %vm98, %v417, 0
    %v422 = vsel %vm98, %v419, 0
    %424 = vmatpush.xpose.msra.mxu0 0.0
    %425 = vmatpush.xpose.msra.mxu0 0.0
    %426 = vmatpush.xpose.msra.mxu0 0.0
    %427 = vmatpush.xpose.msra.mxu0 0.0
    %428 = vmatpush.xpose.msra.mxu0 0.0
    %429 = vmatpush.xpose.msra.mxu0 0.0
    %430 = vmatpush.xpose.msra.mxu0 0.0
    %431 = vmatpush.xpose.msra.mxu0 0.0
    %432 = vmatpush.xpose.msra.mxu0 0.0
    %433 = vmatpush.xpose.msra.mxu0 0.0
    %434 = vmatpush.xpose.msra.mxu0 0.0
    %435 = vmatpush.xpose.msra.mxu0 0.0
    %436 = vmatpush.xpose.msra.mxu0 0.0
    %437 = vmatpush.xpose.msra.mxu0 0.0
    %438 = vmatpush.xpose.msra.mxu0 0.0
    %439 = vmatpush.xpose.msra.mxu0 %v422
    %440 = vmatmul.f32.gmra.mxu0 %v420
    %v441 = vpop.f32.mrf.mxu0
    %v442 = vadd.f32 %v91, %v441
    %443 = vdwg.mxu0
    %444 = vrot.lane.b32.xlu0 %v83, 64
    %v445 = vpop.permute.xlu0 %444
    %446 = vrot.lane.b32.xlu0 %v83, 32
    %v447 = vpop.permute.xlu0 %446
    %v448 = vsel %vm98, %v445, 0
    %v450 = vsel %vm98, %v447, 0
    %452 = vmatpush.xpose.msra.mxu0 0.0
    %453 = vmatpush.xpose.msra.mxu0 0.0
    %454 = vmatpush.xpose.msra.mxu0 0.0
    %455 = vmatpush.xpose.msra.mxu0 0.0
    %456 = vmatpush.xpose.msra.mxu0 0.0
    %457 = vmatpush.xpose.msra.mxu0 0.0
    %458 = vmatpush.xpose.msra.mxu0 0.0
    %459 = vmatpush.xpose.msra.mxu0 0.0
    %460 = vmatpush.xpose.msra.mxu0 0.0
    %461 = vmatpush.xpose.msra.mxu0 0.0
    %462 = vmatpush.xpose.msra.mxu0 0.0
    %463 = vmatpush.xpose.msra.mxu0 0.0
    %464 = vmatpush.xpose.msra.mxu0 0.0
    %465 = vmatpush.xpose.msra.mxu0 0.0
    %466 = vmatpush.xpose.msra.mxu0 0.0
    %467 = vmatpush.xpose.msra.mxu0 %v450
    %468 = vmatmul.f32.gmra.mxu0 %v448
    %v469 = vpop.f32.mrf.mxu0
    %v470 = vadd.f32 %v92, %v469
    %471 = vdwg.mxu0
    %v472 = vsel %vm98, %v442, -inf
    %473 = vmax.xlane.f32.xlu0 %v472
    %v474 = vpop.xlane.xlu0 %473
    %v475 = vsel %vm98, %v470, -inf
    %476 = vmax.xlane.f32.xlu0 %v475
    %v477 = vpop.xlane.xlu0 %476
    %v478 = vsub.f32 %v442, %v474
    %v479 = vsub.f32 %v470, %v477
    %v480 = vmul.f32 %v478, 1.442695
    %v481 = vpow.pop %v480
    %v482 = vmul.f32 %v479, 1.442695
    %v483 = vpow.pop %v482
    %v484 = vsel %vm98, %v481, 0.0
    %485 = vadd.xlane.f32.xlu0 %v484
    %v486 = vpop.xlane.xlu0 %485
    %v487 = vsel %vm98, %v483, 0.0
    %488 = vadd.xlane.f32.xlu0 %v487
    %v489 = vpop.xlane.xlu0 %488
    %v490 = vrcp.pop %v486
    %v491 = vrcp.pop %v489
    %v492 = vmul.f32 %v481, %v490
    %v493 = vmul.f32 %v483, %v491
    %v494 = vadd.f32 %v492, 0.0
    %v495 = vadd.f32 %v493, 0.0
    %496 = vrot.lane.b32.xlu0 %v80, 56
    %v497 = vpop.permute.xlu0 %496
    %498 = vrot.lane.b32.xlu0 %v80, 24
    %v499 = vpop.permute.xlu0 %498
    %v500 = vsel %vm98, %v497, 0
    %v502 = vsel %vm98, %v499, 0
    %504 = vmatpush.xpose.msra.mxu0 0.0
    %505 = vmatpush.xpose.msra.mxu0 0.0
    %506 = vmatpush.xpose.msra.mxu0 0.0
    %507 = vmatpush.xpose.msra.mxu0 0.0
    %508 = vmatpush.xpose.msra.mxu0 0.0
    %509 = vmatpush.xpose.msra.mxu0 0.0
    %510 = vmatpush.xpose.msra.mxu0 0.0
    %511 = vmatpush.xpose.msra.mxu0 0.0
    %512 = vmatpush.xpose.msra.mxu0 0.0
    %513 = vmatpush.xpose.msra.mxu0 0.0
    %514 = vmatpush.xpose.msra.mxu0 0.0
    %515 = vmatpush.xpose.msra.mxu0 0.0
    %516 = vmatpush.xpose.msra.mxu0 0.0
    %517 = vmatpush.xpose.msra.mxu0 0.0
    %518 = vmatpush.xpose.msra.mxu0 0.0
    %519 = vmatpush.xpose.msra.mxu0 %v502
    %520 = vmatmul.f32.gmra.mxu0 %v500
    %v521 = vpop.f32.mrf.mxu0
    %v522 = vadd.f32 %v91, %v521
    %523 = vdwg.mxu0
    %524 = vrot.lane.b32.xlu0 %v83, 56
    %v525 = vpop.permute.xlu0 %524
    %526 = vrot.lane.b32.xlu0 %v83, 24
    %v527 = vpop.permute.xlu0 %526
    %v528 = vsel %vm98, %v525, 0
    %v530 = vsel %vm98, %v527, 0
    %532 = vmatpush.xpose.msra.mxu0 0.0
    %533 = vmatpush.xpose.msra.mxu0 0.0
    %534 = vmatpush.xpose.msra.mxu0 0.0
    %535 = vmatpush.xpose.msra.mxu0 0.0
    %536 = vmatpush.xpose.msra.mxu0 0.0
    %537 = vmatpush.xpose.msra.mxu0 0.0
    %538 = vmatpush.xpose.msra.mxu0 0.0
    %539 = vmatpush.xpose.msra.mxu0 0.0
    %540 = vmatpush.xpose.msra.mxu0 0.0
    %541 = vmatpush.xpose.msra.mxu0 0.0
    %542 = vmatpush.xpose.msra.mxu0 0.0
    %543 = vmatpush.xpose.msra.mxu0 0.0
    %544 = vmatpush.xpose.msra.mxu0 0.0
    %545 = vmatpush.xpose.msra.mxu0 0.0
    %546 = vmatpush.xpose.msra.mxu0 0.0
    %547 = vmatpush.xpose.msra.mxu0 %v530
    %548 = vmatmul.f32.gmra.mxu0 %v528
    %v549 = vpop.f32.mrf.mxu0
    %v550 = vadd.f32 %v92, %v549
    %551 = vdwg.mxu0
    %v552 = vsel %vm98, %v522, -inf
    %553 = vmax.xlane.f32.xlu0 %v552
    %v554 = vpop.xlane.xlu0 %553
    %v555 = vsel %vm98, %v550, -inf
    %556 = vmax.xlane.f32.xlu0 %v555
    %v557 = vpop.xlane.xlu0 %556
    %v558 = vsub.f32 %v522, %v554
    %v559 = vsub.f32 %v550, %v557
    %v560 = vmul.f32 %v558, 1.442695
    %v561 = vpow.pop %v560
    %v562 = vmul.f32 %v559, 1.442695
    %v563 = vpow.pop %v562
    %v564 = vsel %vm98, %v561, 0.0
    %565 = vadd.xlane.f32.xlu0 %v564
    %v566 = vpop.xlane.xlu0 %565
    %v567 = vsel %vm98, %v563, 0.0
    %568 = vadd.xlane.f32.xlu0 %v567
    %v569 = vpop.xlane.xlu0 %568
    %v570 = vrcp.pop %v566
    %v571 = vrcp.pop %v569
    %v572 = vmul.f32 %v561, %v570
    %v573 = vmul.f32 %v563, %v571
    %v574 = vadd.f32 %v494, %v572
    %v575 = vadd.f32 %v495, %v573
    %576 = vrot.lane.b32.xlu0 %v80, 48
    %v577 = vpop.permute.xlu0 %576
    %578 = vrot.lane.b32.xlu0 %v80, 16
    %v579 = vpop.permute.xlu0 %578
    %v580 = vsel %vm98, %v577, 0
    %v582 = vsel %vm98, %v579, 0
    %584 = vmatpush.xpose.msra.mxu0 0.0
    %585 = vmatpush.xpose.msra.mxu0 0.0
    %586 = vmatpush.xpose.msra.mxu0 0.0
    %587 = vmatpush.xpose.msra.mxu0 0.0
    %588 = vmatpush.xpose.msra.mxu0 0.0
    %589 = vmatpush.xpose.msra.mxu0 0.0
    %590 = vmatpush.xpose.msra.mxu0 0.0
    %591 = vmatpush.xpose.msra.mxu0 0.0
    %592 = vmatpush.xpose.msra.mxu0 0.0
    %593 = vmatpush.xpose.msra.mxu0 0.0
    %594 = vmatpush.xpose.msra.mxu0 0.0
    %595 = vmatpush.xpose.msra.mxu0 0.0
    %596 = vmatpush.xpose.msra.mxu0 0.0
    %597 = vmatpush.xpose.msra.mxu0 0.0
    %598 = vmatpush.xpose.msra.mxu0 0.0
    %599 = vmatpush.xpose.msra.mxu0 %v582
    %600 = vmatmul.f32.gmra.mxu0 %v580
    %v601 = vpop.f32.mrf.mxu0
    %v602 = vadd.f32 %v91, %v601
    %603 = vdwg.mxu0
    %604 = vrot.lane.b32.xlu0 %v83, 48
    %v605 = vpop.permute.xlu0 %604
    %606 = vrot.lane.b32.xlu0 %v83, 16
    %v607 = vpop.permute.xlu0 %606
    %v608 = vsel %vm98, %v605, 0
    %v610 = vsel %vm98, %v607, 0
    %612 = vmatpush.xpose.msra.mxu0 0.0
    %613 = vmatpush.xpose.msra.mxu0 0.0
    %614 = vmatpush.xpose.msra.mxu0 0.0
    %615 = vmatpush.xpose.msra.mxu0 0.0
    %616 = vmatpush.xpose.msra.mxu0 0.0
    %617 = vmatpush.xpose.msra.mxu0 0.0
    %618 = vmatpush.xpose.msra.mxu0 0.0
    %619 = vmatpush.xpose.msra.mxu0 0.0
    %620 = vmatpush.xpose.msra.mxu0 0.0
    %621 = vmatpush.xpose.msra.mxu0 0.0
    %622 = vmatpush.xpose.msra.mxu0 0.0
    %623 = vmatpush.xpose.msra.mxu0 0.0
    %624 = vmatpush.xpose.msra.mxu0 0.0
    %625 = vmatpush.xpose.msra.mxu0 0.0
    %626 = vmatpush.xpose.msra.mxu0 0.0
    %627 = vmatpush.xpose.msra.mxu0 %v610
    %628 = vmatmul.f32.gmra.mxu0 %v608
    %v629 = vpop.f32.mrf.mxu0
    %v630 = vadd.f32 %v92, %v629
    %631 = vdwg.mxu0
    %v632 = vsel %vm98, %v602, -inf
    %633 = vmax.xlane.f32.xlu0 %v632
    %v634 = vpop.xlane.xlu0 %633
    %v635 = vsel %vm98, %v630, -inf
    %636 = vmax.xlane.f32.xlu0 %v635
    %v637 = vpop.xlane.xlu0 %636
    %v638 = vsub.f32 %v602, %v634
    %v639 = vsub.f32 %v630, %v637
    %v640 = vmul.f32 %v638, 1.442695
    %v641 = vpow.pop %v640
    %v642 = vmul.f32 %v639, 1.442695
    %v643 = vpow.pop %v642
    %v644 = vsel %vm98, %v641, 0.0
    %645 = vadd.xlane.f32.xlu0 %v644
    %v646 = vpop.xlane.xlu0 %645
    %v647 = vsel %vm98, %v643, 0.0
    %648 = vadd.xlane.f32.xlu0 %v647
    %v649 = vpop.xlane.xlu0 %648
    %v650 = vrcp.pop %v646
    %v651 = vrcp.pop %v649
    %v652 = vmul.f32 %v641, %v650
    %v653 = vmul.f32 %v643, %v651
    %v654 = vadd.f32 %v574, %v652
    %v655 = vadd.f32 %v575, %v653
    %656 = vrot.lane.b32.xlu0 %v80, 40
    %v657 = vpop.permute.xlu0 %656
    %658 = vrot.lane.b32.xlu0 %v80, 8
    %v659 = vpop.permute.xlu0 %658
    %v660 = vsel %vm98, %v657, 0
    %v662 = vsel %vm98, %v659, 0
    %664 = vmatpush.xpose.msra.mxu0 0.0
    %665 = vmatpush.xpose.msra.mxu0 0.0
    %666 = vmatpush.xpose.msra.mxu0 0.0
    %667 = vmatpush.xpose.msra.mxu0 0.0
    %668 = vmatpush.xpose.msra.mxu0 0.0
    %669 = vmatpush.xpose.msra.mxu0 0.0
    %670 = vmatpush.xpose.msra.mxu0 0.0
    %671 = vmatpush.xpose.msra.mxu0 0.0
    %672 = vmatpush.xpose.msra.mxu0 0.0
    %673 = vmatpush.xpose.msra.mxu0 0.0
    %674 = vmatpush.xpose.msra.mxu0 0.0
    %675 = vmatpush.xpose.msra.mxu0 0.0
    %676 = vmatpush.xpose.msra.mxu0 0.0
    %677 = vmatpush.xpose.msra.mxu0 0.0
    %678 = vmatpush.xpose.msra.mxu0 0.0
    %679 = vmatpush.xpose.msra.mxu0 %v662
    %680 = vmatmul.f32.gmra.mxu0 %v660
    %v681 = vpop.f32.mrf.mxu0
    %v682 = vadd.f32 %v91, %v681
    %683 = vdwg.mxu0
    %684 = vrot.lane.b32.xlu0 %v83, 40
    %v685 = vpop.permute.xlu0 %684
    %686 = vrot.lane.b32.xlu0 %v83, 8
    %v687 = vpop.permute.xlu0 %686
    %v688 = vsel %vm98, %v685, 0
    %v690 = vsel %vm98, %v687, 0
    %692 = vmatpush.xpose.msra.mxu0 0.0
    %693 = vmatpush.xpose.msra.mxu0 0.0
    %694 = vmatpush.xpose.msra.mxu0 0.0
    %695 = vmatpush.xpose.msra.mxu0 0.0
    %696 = vmatpush.xpose.msra.mxu0 0.0
    %697 = vmatpush.xpose.msra.mxu0 0.0
    %698 = vmatpush.xpose.msra.mxu0 0.0
    %699 = vmatpush.xpose.msra.mxu0 0.0
    %700 = vmatpush.xpose.msra.mxu0 0.0
    %701 = vmatpush.xpose.msra.mxu0 0.0
    %702 = vmatpush.xpose.msra.mxu0 0.0
    %703 = vmatpush.xpose.msra.mxu0 0.0
    %704 = vmatpush.xpose.msra.mxu0 0.0
    %705 = vmatpush.xpose.msra.mxu0 0.0
    %706 = vmatpush.xpose.msra.mxu0 0.0
    %707 = vmatpush.xpose.msra.mxu0 %v690
    %708 = vmatmul.f32.gmra.mxu0 %v688
    %v709 = vpop.f32.mrf.mxu0
    %v710 = vadd.f32 %v92, %v709
    %711 = vdwg.mxu0
    %v712 = vsel %vm98, %v682, -inf
    %713 = vmax.xlane.f32.xlu0 %v712
    %v714 = vpop.xlane.xlu0 %713
    %v715 = vsel %vm98, %v710, -inf
    %716 = vmax.xlane.f32.xlu0 %v715
    %v717 = vpop.xlane.xlu0 %716
    %v718 = vsub.f32 %v682, %v714
    %v719 = vsub.f32 %v710, %v717
    %v720 = vmul.f32 %v718, 1.442695
    %v721 = vpow.pop %v720
    %v722 = vmul.f32 %v719, 1.442695
    %v723 = vpow.pop %v722
    %v724 = vsel %vm98, %v721, 0.0
    %725 = vadd.xlane.f32.xlu0 %v724
    %v726 = vpop.xlane.xlu0 %725
    %v727 = vsel %vm98, %v723, 0.0
    %728 = vadd.xlane.f32.xlu0 %v727
    %v729 = vpop.xlane.xlu0 %728
    %v730 = vrcp.pop %v726
    %v731 = vrcp.pop %v729
    %v732 = vmul.f32 %v721, %v730
    %v733 = vmul.f32 %v723, %v731
    %v734 = vadd.f32 %v654, %v732
    %v735 = vadd.f32 %v655, %v733
    %v736 = vmul.f32 %v734, 0.25
    %v737 = vmul.f32 %v735, 0.25
    %v738 = vsub.f32 1.0, %v41
    %v739 = vsub.f32 1.0, %v42
    %v740 = vsub.f32 1.0, %v43
    %v741 = vsub.f32 1.0, %v44
    %743 = vset.pattern.permute.xlu0 0
    %744 = vperm.xlu0 %743, %v740
    %v745 = vpop.permute.xlu0 %744
    %748 = vset.pattern.permute.xlu0 0
    %749 = vperm.xlu0 %748, %v741
    %v750 = vpop.permute.xlu0 %749
    %v754 = vperm.slane %v738, 0
    %v755 = vperm.slane %v739, 0
    %v758 = vmul.f32 %v745, %v754
    %v759 = vmul.f32 %v750, %v755
    %v760 = vlaneseq
    %v761 = vand.u32 %v760, 127
    %762 = vset.pattern.permute.xlu0 0
    %763 = vperm.xlu0 %762, %v45
    %v764 = vpop.permute.xlu0 %763
    %765 = vset.pattern.permute.xlu0 0
    %766 = vperm.xlu0 %765, %v46
    %v767 = vpop.permute.xlu0 %766
    %vm768 = vcmp.eq.s32.totalorder %v761, %v764
    %vm769 = vcmp.eq.s32.totalorder %v761, %v767
    %v770 = vsel %vm768, 1, 0
    %v771 = vsel %vm769, 1, 0
    %v772 = vcvt.s32.f32 %v770
    %v773 = vcvt.s32.f32 %v771
    %v774 = vadd.f32 %v772, 0.0
    %v775 = vadd.f32 %v773, 0.0
    %776 = vset.pattern.permute.xlu0 1
    %777 = vperm.xlu0 %776, %v45
    %v778 = vpop.permute.xlu0 %777
    %779 = vset.pattern.permute.xlu0 1
    %780 = vperm.xlu0 %779, %v46
    %v781 = vpop.permute.xlu0 %780
    %vm782 = vcmp.eq.s32.totalorder %v761, %v778
    %vm783 = vcmp.eq.s32.totalorder %v761, %v781
    %v784 = vsel %vm782, 1, 0
    %v785 = vsel %vm783, 1, 0
    %v786 = vcvt.s32.f32 %v784
    %v787 = vcvt.s32.f32 %v785
    %v788 = vadd.f32 %v774, %v786
    %v789 = vadd.f32 %v775, %v787
    %790 = vset.pattern.permute.xlu0 2
    %791 = vperm.xlu0 %790, %v45
    %v792 = vpop.permute.xlu0 %791
    %793 = vset.pattern.permute.xlu0 2
    %794 = vperm.xlu0 %793, %v46
    %v795 = vpop.permute.xlu0 %794
    %vm796 = vcmp.eq.s32.totalorder %v761, %v792
    %vm797 = vcmp.eq.s32.totalorder %v761, %v795
    %v798 = vsel %vm796, 1, 0
    %v799 = vsel %vm797, 1, 0
    %v800 = vcvt.s32.f32 %v798
    %v801 = vcvt.s32.f32 %v799
    %v802 = vadd.f32 %v788, %v800
    %v803 = vadd.f32 %v789, %v801
    %804 = vset.pattern.permute.xlu0 3
    %805 = vperm.xlu0 %804, %v45
    %v806 = vpop.permute.xlu0 %805
    %807 = vset.pattern.permute.xlu0 3
    %808 = vperm.xlu0 %807, %v46
    %v809 = vpop.permute.xlu0 %808
    %vm810 = vcmp.eq.s32.totalorder %v761, %v806
    %vm811 = vcmp.eq.s32.totalorder %v761, %v809
    %v812 = vsel %vm810, 1, 0
    %v813 = vsel %vm811, 1, 0
    %v814 = vcvt.s32.f32 %v812
    %v815 = vcvt.s32.f32 %v813
    %v816 = vadd.f32 %v802, %v814
    %v817 = vadd.f32 %v803, %v815
    %818 = vset.pattern.permute.xlu0 4
    %819 = vperm.xlu0 %818, %v45
    %v820 = vpop.permute.xlu0 %819
    %821 = vset.pattern.permute.xlu0 4
    %822 = vperm.xlu0 %821, %v46
    %v823 = vpop.permute.xlu0 %822
    %vm824 = vcmp.eq.s32.totalorder %v761, %v820
    %vm825 = vcmp.eq.s32.totalorder %v761, %v823
    %v826 = vsel %vm824, 1, 0
    %v827 = vsel %vm825, 1, 0
    %v828 = vcvt.s32.f32 %v826
    %v829 = vcvt.s32.f32 %v827
    %v830 = vadd.f32 %v816, %v828
    %v831 = vadd.f32 %v817, %v829
    %832 = vset.pattern.permute.xlu0 5
    %833 = vperm.xlu0 %832, %v45
    %v834 = vpop.permute.xlu0 %833
    %835 = vset.pattern.permute.xlu0 5
    %836 = vperm.xlu0 %835, %v46
    %v837 = vpop.permute.xlu0 %836
    %vm838 = vcmp.eq.s32.totalorder %v761, %v834
    %vm839 = vcmp.eq.s32.totalorder %v761, %v837
    %v840 = vsel %vm838, 1, 0
    %v841 = vsel %vm839, 1, 0
    %v842 = vcvt.s32.f32 %v840
    %v843 = vcvt.s32.f32 %v841
    %v844 = vadd.f32 %v830, %v842
    %v845 = vadd.f32 %v831, %v843
    %v846 = vmul.f32 %v844, %v758
    %v847 = vmul.f32 %v845, %v759
    %v848 = vsub.f32 %v414, %v736
    %v849 = vsub.f32 %v415, %v737
    %v850 = vmul.f32 %v848, 4.0
    %v851 = vmul.f32 %v849, 4.0
    %v852 = vmul.f32 %v850, %v758
    %v853 = vmul.f32 %v851, %v759
    %v854 = vadd.f32 %v846, %v852
    %v855 = vadd.f32 %v847, %v853
    %856 = vxpose.xlu0.b32.start [1/16] %v854, 128
    %857 = vxpose.xlu0.b32.cont [2/16] 0.0, 128
    %858 = vxpose.xlu0.b32.cont [3/16] 0.0, 128
    %859 = vxpose.xlu0.b32.cont [4/16] 0.0, 128
    %860 = vxpose.xlu0.b32.cont [5/16] 0.0, 128
    %861 = vxpose.xlu0.b32.cont [6/16] 0.0, 128
    %862 = vxpose.xlu0.b32.cont [7/16] 0.0, 128
    %863 = vxpose.xlu0.b32.cont [8/16] 0.0, 128
    %864 = vxpose.xlu0.b32.cont [9/16] 0.0, 128
    %865 = vxpose.xlu0.b32.cont [10/16] 0.0, 128
    %866 = vxpose.xlu0.b32.cont [11/16] 0.0, 128
    %867 = vxpose.xlu0.b32.cont [12/16] 0.0, 128
    %868 = vxpose.xlu0.b32.cont [13/16] 0.0, 128
    %869 = vxpose.xlu0.b32.cont [14/16] 0.0, 128
    %870 = vxpose.xlu0.b32.cont [15/16] 0.0, 128
    %871 = vxpose.xlu0.b32.end [16/16] 0.0, 128
    %v872 = vpop.trf.xlu0
    %v873 = vpop.trf.xlu0
    %v874 = vpop.trf.xlu0
    %v875 = vpop.trf.xlu0
    %v876 = vpop.trf.xlu0
    %v877 = vpop.trf.xlu0
    %v878 = vpop.trf.xlu0
    %v879 = vpop.trf.xlu0
    %v880 = vpop.trf.xlu0
    %v881 = vpop.trf.xlu0
    %v882 = vpop.trf.xlu0
    %v883 = vpop.trf.xlu0
    %v884 = vpop.trf.xlu0
    %v885 = vpop.trf.xlu0
    %v886 = vpop.trf.xlu0
    %v887 = vpop.trf.xlu0
    %888 = vxpose.xlu0.b32.start [1/16] %v855, 128
    %889 = vxpose.xlu0.b32.cont [2/16] 0.0, 128
    %890 = vxpose.xlu0.b32.cont [3/16] 0.0, 128
    %891 = vxpose.xlu0.b32.cont [4/16] 0.0, 128
    %892 = vxpose.xlu0.b32.cont [5/16] 0.0, 128
    %893 = vxpose.xlu0.b32.cont [6/16] 0.0, 128
    %894 = vxpose.xlu0.b32.cont [7/16] 0.0, 128
    %895 = vxpose.xlu0.b32.cont [8/16] 0.0, 128
    %896 = vxpose.xlu0.b32.cont [9/16] 0.0, 128
    %897 = vxpose.xlu0.b32.cont [10/16] 0.0, 128
    %898 = vxpose.xlu0.b32.cont [11/16] 0.0, 128
    %899 = vxpose.xlu0.b32.cont [12/16] 0.0, 128
    %900 = vxpose.xlu0.b32.cont [13/16] 0.0, 128
    %901 = vxpose.xlu0.b32.cont [14/16] 0.0, 128
    %902 = vxpose.xlu0.b32.cont [15/16] 0.0, 128
    %903 = vxpose.xlu0.b32.end [16/16] 0.0, 128
    %v904 = vpop.trf.xlu0
    %v905 = vpop.trf.xlu0
    %v906 = vpop.trf.xlu0
    %v907 = vpop.trf.xlu0
    %v908 = vpop.trf.xlu0
    %v909 = vpop.trf.xlu0
    %v910 = vpop.trf.xlu0
    %v911 = vpop.trf.xlu0
    %v912 = vpop.trf.xlu0
    %v913 = vpop.trf.xlu0
    %v914 = vpop.trf.xlu0
    %v915 = vpop.trf.xlu0
    %v916 = vpop.trf.xlu0
    %v917 = vpop.trf.xlu0
    %v918 = vpop.trf.xlu0
    %v919 = vpop.trf.xlu0
    %v920 = vadd.f32 %v854, %v872
    %v921 = vadd.f32 %v855, %v904
    %v922 = vmul.f32 %v920, 0.5
    %v923 = vmul.f32 %v921, 0.5
    %v924 = vsel %vm98, %v922, -inf
    %925 = vmax.xlane.f32.xlu0 %v924
    %v926 = vpop.xlane.xlu0 %925
    %v927 = vsel %vm98, %v923, -inf
    %928 = vmax.xlane.f32.xlu0 %v927
    %v929 = vpop.xlane.xlu0 %928
    %vm930 = vcmp.eq.f32.partialorder %v922, %v926
    %vm931 = vcmp.eq.f32.partialorder %v923, %v929
    %v932 = vsel %vm930, %v761, 8
    %v933 = vsel %vm931, %v761, 8
    %v934 = vsel %vm98, %v932, 2147483647
    %v935 = vand.u32 %v934, 65535
    %v936 = vshra.s32 %v934, 16
    %v937 = vcvt.s32.f32 %v935
    %v938 = vcvt.s32.f32 %v936
    %939 = vmin.xlane.f32.xlu0 %v938
    %v940 = vpop.xlane.xlu0 %939
    %vm941 = vcmp.eq.f32.partialorder %v938, %v940
    %v942 = vsel %vm941, %v937, inf
    %943 = vmin.xlane.f32.xlu0 %v942
    %v944 = vpop.xlane.xlu0 %943
    %v945 = vcvt.f32.s32 %v944
    %v946 = vcvt.f32.s32 %v940
    %v947 = vshll.u32 %v946, 16
    %v948 = vadd.s32 %v947, %v945
    %v949 = vsel %vm98, %v933, 2147483647
    %v950 = vand.u32 %v949, 65535
    %v951 = vshra.s32 %v949, 16
    %v952 = vcvt.s32.f32 %v950
    %v953 = vcvt.s32.f32 %v951
    %954 = vmin.xlane.f32.xlu0 %v953
    %v955 = vpop.xlane.xlu0 %954
    %vm956 = vcmp.eq.f32.partialorder %v953, %v955
    %v957 = vsel %vm956, %v952, inf
    %958 = vmin.xlane.f32.xlu0 %v957
    %v959 = vpop.xlane.xlu0 %958
    %v960 = vcvt.f32.s32 %v959
    %v961 = vcvt.f32.s32 %v955
    %v962 = vshll.u32 %v961, 16
    %v963 = vadd.s32 %v962, %v960
    %vm964 = vcmp.eq.s32.totalorder %v761, 0
    %v965 = vsel %vm964, 1, 0
    %v966 = vmul.u32 %v948, %v965
    %v967 = vmul.u32 %v963, %v965
    %vm968 = vcmp.eq.s32.totalorder %v761, %v948
    %vm969 = vcmp.eq.s32.totalorder %v761, %v963
    %v970 = vsel %vm968, 1, 0
    %v971 = vsel %vm969, 1, 0
    %v972 = vcvt.s32.f32 %v970
    %v973 = vcvt.s32.f32 %v971
    %v974 = vsub.f32 %v922, %v972
    %v975 = vsub.f32 %v923, %v973
    %v976 = vsel %vm98, %v974, -inf
    %977 = vmax.xlane.f32.xlu0 %v976
    %v978 = vpop.xlane.xlu0 %977
    %v979 = vsel %vm98, %v975, -inf
    %980 = vmax.xlane.f32.xlu0 %v979
    %v981 = vpop.xlane.xlu0 %980
    %vm982 = vcmp.eq.f32.partialorder %v974, %v978
    %vm983 = vcmp.eq.f32.partialorder %v975, %v981
    %v984 = vsel %vm982, %v761, 8
    %v985 = vsel %vm983, %v761, 8
    %v986 = vsel %vm98, %v984, 2147483647
    %v987 = vand.u32 %v986, 65535
    %v988 = vshra.s32 %v986, 16
    %v989 = vcvt.s32.f32 %v987
    %v990 = vcvt.s32.f32 %v988
    %991 = vmin.xlane.f32.xlu0 %v990
    %v992 = vpop.xlane.xlu0 %991
    %vm993 = vcmp.eq.f32.partialorder %v990, %v992
    %v994 = vsel %vm993, %v989, inf
    %995 = vmin.xlane.f32.xlu0 %v994
    %v996 = vpop.xlane.xlu0 %995
    %v997 = vcvt.f32.s32 %v996
    %v998 = vcvt.f32.s32 %v992
    %v999 = vshll.u32 %v998, 16
    %v1000 = vadd.s32 %v999, %v997
    %v1001 = vsel %vm98, %v985, 2147483647
    %v1002 = vand.u32 %v1001, 65535
    %v1003 = vshra.s32 %v1001, 16
    %v1004 = vcvt.s32.f32 %v1002
    %v1005 = vcvt.s32.f32 %v1003
    %1006 = vmin.xlane.f32.xlu0 %v1005
    %v1007 = vpop.xlane.xlu0 %1006
    %vm1008 = vcmp.eq.f32.partialorder %v1005, %v1007
    %v1009 = vsel %vm1008, %v1004, inf
    %1010 = vmin.xlane.f32.xlu0 %v1009
    %v1011 = vpop.xlane.xlu0 %1010
    %v1012 = vcvt.f32.s32 %v1011
    %v1013 = vcvt.f32.s32 %v1007
    %v1014 = vshll.u32 %v1013, 16
    %v1015 = vadd.s32 %v1014, %v1012
    %vm1016 = vcmp.eq.s32.totalorder %v761, 1
    %v1017 = vsel %vm1016, 1, 0
    %v1018 = vmul.u32 %v1000, %v1017
    %v1019 = vmul.u32 %v1015, %v1017
    %v1020 = vadd.s32 %v966, %v1018
    %v1021 = vadd.s32 %v967, %v1019
    %vm1022 = vcmp.eq.s32.totalorder %v761, %v1000
    %vm1023 = vcmp.eq.s32.totalorder %v761, %v1015
    %v1024 = vsel %vm1022, 1, 0
    %v1025 = vsel %vm1023, 1, 0
    %v1026 = vcvt.s32.f32 %v1024
    %v1027 = vcvt.s32.f32 %v1025
    %v1028 = vsub.f32 %v974, %v1026
    %v1029 = vsub.f32 %v975, %v1027
    %v1030 = vsel %vm98, %v1028, -inf
    %1031 = vmax.xlane.f32.xlu0 %v1030
    %v1032 = vpop.xlane.xlu0 %1031
    %v1033 = vsel %vm98, %v1029, -inf
    %1034 = vmax.xlane.f32.xlu0 %v1033
    %v1035 = vpop.xlane.xlu0 %1034
    %vm1036 = vcmp.eq.f32.partialorder %v1028, %v1032
    %vm1037 = vcmp.eq.f32.partialorder %v1029, %v1035
    %v1038 = vsel %vm1036, %v761, 8
    %v1039 = vsel %vm1037, %v761, 8
    %v1040 = vsel %vm98, %v1038, 2147483647
    %v1041 = vand.u32 %v1040, 65535
    %v1042 = vshra.s32 %v1040, 16
    %v1043 = vcvt.s32.f32 %v1041
    %v1044 = vcvt.s32.f32 %v1042
    %1045 = vmin.xlane.f32.xlu0 %v1044
    %v1046 = vpop.xlane.xlu0 %1045
    %vm1047 = vcmp.eq.f32.partialorder %v1044, %v1046
    %v1048 = vsel %vm1047, %v1043, inf
    %1049 = vmin.xlane.f32.xlu0 %v1048
    %v1050 = vpop.xlane.xlu0 %1049
    %v1051 = vcvt.f32.s32 %v1050
    %v1052 = vcvt.f32.s32 %v1046
    %v1053 = vshll.u32 %v1052, 16
    %v1054 = vadd.s32 %v1053, %v1051
    %v1055 = vsel %vm98, %v1039, 2147483647
    %v1056 = vand.u32 %v1055, 65535
    %v1057 = vshra.s32 %v1055, 16
    %v1058 = vcvt.s32.f32 %v1056
    %v1059 = vcvt.s32.f32 %v1057
    %1060 = vmin.xlane.f32.xlu0 %v1059
    %v1061 = vpop.xlane.xlu0 %1060
    %vm1062 = vcmp.eq.f32.partialorder %v1059, %v1061
    %v1063 = vsel %vm1062, %v1058, inf
    %1064 = vmin.xlane.f32.xlu0 %v1063
    %v1065 = vpop.xlane.xlu0 %1064
    %v1066 = vcvt.f32.s32 %v1065
    %v1067 = vcvt.f32.s32 %v1061
    %v1068 = vshll.u32 %v1067, 16
    %v1069 = vadd.s32 %v1068, %v1066
    %vm1070 = vcmp.eq.s32.totalorder %v761, 2
    %v1071 = vsel %vm1070, 1, 0
    %v1072 = vmul.u32 %v1054, %v1071
    %v1073 = vmul.u32 %v1069, %v1071
    %v1074 = vadd.s32 %v1020, %v1072
    %v1075 = vadd.s32 %v1021, %v1073
    %vm1076 = vcmp.eq.s32.totalorder %v761, %v1054
    %vm1077 = vcmp.eq.s32.totalorder %v761, %v1069
    %v1078 = vsel %vm1076, 1, 0
    %v1079 = vsel %vm1077, 1, 0
    %v1080 = vcvt.s32.f32 %v1078
    %v1081 = vcvt.s32.f32 %v1079
    %v1082 = vsub.f32 %v1028, %v1080
    %v1083 = vsub.f32 %v1029, %v1081
    %v1084 = vsel %vm98, %v1082, -inf
    %1085 = vmax.xlane.f32.xlu0 %v1084
    %v1086 = vpop.xlane.xlu0 %1085
    %v1087 = vsel %vm98, %v1083, -inf
    %1088 = vmax.xlane.f32.xlu0 %v1087
    %v1089 = vpop.xlane.xlu0 %1088
    %vm1090 = vcmp.eq.f32.partialorder %v1082, %v1086
    %vm1091 = vcmp.eq.f32.partialorder %v1083, %v1089
    %v1092 = vsel %vm1090, %v761, 8
    %v1093 = vsel %vm1091, %v761, 8
    %v1094 = vsel %vm98, %v1092, 2147483647
    %v1095 = vand.u32 %v1094, 65535
    %v1096 = vshra.s32 %v1094, 16
    %v1097 = vcvt.s32.f32 %v1095
    %v1098 = vcvt.s32.f32 %v1096
    %1099 = vmin.xlane.f32.xlu0 %v1098
    %v1100 = vpop.xlane.xlu0 %1099
    %vm1101 = vcmp.eq.f32.partialorder %v1098, %v1100
    %v1102 = vsel %vm1101, %v1097, inf
    %1103 = vmin.xlane.f32.xlu0 %v1102
    %v1104 = vpop.xlane.xlu0 %1103
    %v1105 = vcvt.f32.s32 %v1104
    %v1106 = vcvt.f32.s32 %v1100
    %v1107 = vshll.u32 %v1106, 16
    %v1108 = vadd.s32 %v1107, %v1105
    %v1109 = vsel %vm98, %v1093, 2147483647
    %v1110 = vand.u32 %v1109, 65535
    %v1111 = vshra.s32 %v1109, 16
    %v1112 = vcvt.s32.f32 %v1110
    %v1113 = vcvt.s32.f32 %v1111
    %1114 = vmin.xlane.f32.xlu0 %v1113
    %v1115 = vpop.xlane.xlu0 %1114
    %vm1116 = vcmp.eq.f32.partialorder %v1113, %v1115
    %v1117 = vsel %vm1116, %v1112, inf
    %1118 = vmin.xlane.f32.xlu0 %v1117
    %v1119 = vpop.xlane.xlu0 %1118
    %v1120 = vcvt.f32.s32 %v1119
    %v1121 = vcvt.f32.s32 %v1115
    %v1122 = vshll.u32 %v1121, 16
    %v1123 = vadd.s32 %v1122, %v1120
    %vm1124 = vcmp.eq.s32.totalorder %v761, 3
    %v1125 = vsel %vm1124, 1, 0
    %v1126 = vmul.u32 %v1108, %v1125
    %v1127 = vmul.u32 %v1123, %v1125
    %v1128 = vadd.s32 %v1074, %v1126
    %v1129 = vadd.s32 %v1075, %v1127
    %vm1130 = vcmp.eq.s32.totalorder %v761, %v1108
    %vm1131 = vcmp.eq.s32.totalorder %v761, %v1123
    %v1132 = vsel %vm1130, 1, 0
    %v1133 = vsel %vm1131, 1, 0
    %v1134 = vcvt.s32.f32 %v1132
    %v1135 = vcvt.s32.f32 %v1133
    %v1136 = vsub.f32 %v1082, %v1134
    %v1137 = vsub.f32 %v1083, %v1135
    %v1138 = vsel %vm98, %v1136, -inf
    %1139 = vmax.xlane.f32.xlu0 %v1138
    %v1140 = vpop.xlane.xlu0 %1139
    %v1141 = vsel %vm98, %v1137, -inf
    %1142 = vmax.xlane.f32.xlu0 %v1141
    %v1143 = vpop.xlane.xlu0 %1142
    %vm1144 = vcmp.eq.f32.partialorder %v1136, %v1140
    %vm1145 = vcmp.eq.f32.partialorder %v1137, %v1143
    %v1146 = vsel %vm1144, %v761, 8
    %v1147 = vsel %vm1145, %v761, 8
    %v1148 = vsel %vm98, %v1146, 2147483647
    %v1149 = vand.u32 %v1148, 65535
    %v1150 = vshra.s32 %v1148, 16
    %v1151 = vcvt.s32.f32 %v1149
    %v1152 = vcvt.s32.f32 %v1150
    %1153 = vmin.xlane.f32.xlu0 %v1152
    %v1154 = vpop.xlane.xlu0 %1153
    %vm1155 = vcmp.eq.f32.partialorder %v1152, %v1154
    %v1156 = vsel %vm1155, %v1151, inf
    %1157 = vmin.xlane.f32.xlu0 %v1156
    %v1158 = vpop.xlane.xlu0 %1157
    %v1159 = vcvt.f32.s32 %v1158
    %v1160 = vcvt.f32.s32 %v1154
    %v1161 = vshll.u32 %v1160, 16
    %v1162 = vadd.s32 %v1161, %v1159
    %v1163 = vsel %vm98, %v1147, 2147483647
    %v1164 = vand.u32 %v1163, 65535
    %v1165 = vshra.s32 %v1163, 16
    %v1166 = vcvt.s32.f32 %v1164
    %v1167 = vcvt.s32.f32 %v1165
    %1168 = vmin.xlane.f32.xlu0 %v1167
    %v1169 = vpop.xlane.xlu0 %1168
    %vm1170 = vcmp.eq.f32.partialorder %v1167, %v1169
    %v1171 = vsel %vm1170, %v1166, inf
    %1172 = vmin.xlane.f32.xlu0 %v1171
    %v1173 = vpop.xlane.xlu0 %1172
    %v1174 = vcvt.f32.s32 %v1173
    %v1175 = vcvt.f32.s32 %v1169
    %v1176 = vshll.u32 %v1175, 16
    %v1177 = vadd.s32 %v1176, %v1174
    %vm1178 = vcmp.eq.s32.totalorder %v761, 4
    %v1179 = vsel %vm1178, 1, 0
    %v1180 = vmul.u32 %v1162, %v1179
    %v1181 = vmul.u32 %v1177, %v1179
    %v1182 = vadd.s32 %v1128, %v1180
    %v1183 = vadd.s32 %v1129, %v1181
    %vm1184 = vcmp.eq.s32.totalorder %v761, %v1162
    %vm1185 = vcmp.eq.s32.totalorder %v761, %v1177
    %v1186 = vsel %vm1184, 1, 0
    %v1187 = vsel %vm1185, 1, 0
    %v1188 = vcvt.s32.f32 %v1186
    %v1189 = vcvt.s32.f32 %v1187
    %v1190 = vsub.f32 %v1136, %v1188
    %v1191 = vsub.f32 %v1137, %v1189
    %v1192 = vsel %vm98, %v1190, -inf
    %1193 = vmax.xlane.f32.xlu0 %v1192
    %v1194 = vpop.xlane.xlu0 %1193
    %v1195 = vsel %vm98, %v1191, -inf
    %1196 = vmax.xlane.f32.xlu0 %v1195
    %v1197 = vpop.xlane.xlu0 %1196
    %vm1198 = vcmp.eq.f32.partialorder %v1190, %v1194
    %vm1199 = vcmp.eq.f32.partialorder %v1191, %v1197
    %v1200 = vsel %vm1198, %v761, 8
    %v1201 = vsel %vm1199, %v761, 8
    %v1202 = vsel %vm98, %v1200, 2147483647
    %v1203 = vand.u32 %v1202, 65535
    %v1204 = vshra.s32 %v1202, 16
    %v1205 = vcvt.s32.f32 %v1203
    %v1206 = vcvt.s32.f32 %v1204
    %1207 = vmin.xlane.f32.xlu0 %v1206
    %v1208 = vpop.xlane.xlu0 %1207
    %vm1209 = vcmp.eq.f32.partialorder %v1206, %v1208
    %v1210 = vsel %vm1209, %v1205, inf
    %1211 = vmin.xlane.f32.xlu0 %v1210
    %v1212 = vpop.xlane.xlu0 %1211
    %v1213 = vcvt.f32.s32 %v1212
    %v1214 = vcvt.f32.s32 %v1208
    %v1215 = vshll.u32 %v1214, 16
    %v1216 = vadd.s32 %v1215, %v1213
    %v1217 = vsel %vm98, %v1201, 2147483647
    %v1218 = vand.u32 %v1217, 65535
    %v1219 = vshra.s32 %v1217, 16
    %v1220 = vcvt.s32.f32 %v1218
    %v1221 = vcvt.s32.f32 %v1219
    %1222 = vmin.xlane.f32.xlu0 %v1221
    %v1223 = vpop.xlane.xlu0 %1222
    %vm1224 = vcmp.eq.f32.partialorder %v1221, %v1223
    %v1225 = vsel %vm1224, %v1220, inf
    %1226 = vmin.xlane.f32.xlu0 %v1225
    %v1227 = vpop.xlane.xlu0 %1226
    %v1228 = vcvt.f32.s32 %v1227
    %v1229 = vcvt.f32.s32 %v1223
    %v1230 = vshll.u32 %v1229, 16
    %v1231 = vadd.s32 %v1230, %v1228
    %vm1232 = vcmp.eq.s32.totalorder %v761, 5
    %v1233 = vsel %vm1232, 1, 0
    %v1234 = vmul.u32 %v1216, %v1233
    %v1235 = vmul.u32 %v1231, %v1233
    %v1236 = vadd.s32 %v1182, %v1234
    %v1237 = vadd.s32 %v1183, %v1235
    %vm1238 = vcmask 48128
    %1239 = vst.msk [vmem:[%s6] sm:$0xff] %vm1238, %v1236
    %1240 = vst.msk [vmem:[%s6 + $0x8] sm:$0xff] %vm1238, %v1237
    // Predicated region
    $region30: #{tpu_custom_call.1} parent=1 // pred_check
      _
    $region31: #{tpu_custom_call.1} parent=1 // pred_check_branch
      %1242 = sbr.rel (0) target = $region33
    $region32: #{tpu_custom_call.1} parent=1 // pred_region
      _
    $region33: #{tpu_custom_call.1} parent=1 // pred_fallthru
      _
    // Predicated region
    $region34: #{tpu_custom_call.1} parent=1 // pred_check
      _
    $region35: #{tpu_custom_call.1} parent=1 // pred_check_branch
      %1244 = sbr.rel (0) target = $region37
    $region36: #{tpu_custom_call.1} parent=1 // pred_region
      _
    $region37: #{tpu_custom_call.1} parent=1 // pred_fallthru
      _
    %1245 = vsyncpa [#allocation3], 1

</llo_original>
